<compile_context>
chip_gen: v5e
topology: v5e:2x2
jax: 0.10.0
libtpu: 0.0.40
codegen_flags: <defaults>
</compile_context>

<pallas_src>
import functools

import jax
import jax.numpy as jnp
from jax.experimental import pallas as pl
from jax.experimental.pallas import tpu as pltpu

# ----------------------- small LlamaConfig-like setup -----------------------
VOCAB = 256
HIDDEN = 128
N_HEADS = 4
N_KV_HEADS = 2
HEAD_DIM = HIDDEN // N_HEADS          # 32
INTER = 256
N_LAYERS = 2
EPS = 1e-6
ROPE_THETA = 10000.0
T = 8                                 # number of tokens (flat, vLLM-style)

Q_SIZE = N_HEADS * HEAD_DIM           # 128
KV_SIZE = N_KV_HEADS * HEAD_DIM       # 64
QKV_SIZE = Q_SIZE + 2 * KV_SIZE       # 256


# ------------------------------ fused Pallas kernel --------------------------
def _tinyllm_fused_kernel(h_ref, cosq_ref, sinq_ref, cosk_ref, sink_ref,
                          rotq_ref, rotk_ref,
                          in_ln_ref, post_ln_ref, wqkv_ref, bqkv_ref,
                          wo_ref, wgu_ref, wdown_ref, final_ln_ref,
                          o_ref, *,
                          n_layers, n_heads, n_kv_heads, head_dim, inter,
                          eps, scale):
    f32 = jnp.float32
    h = h_ref[...].astype(f32)                               # (T, H)
    Tt = h.shape[0]

    # causal mask (computed once, reused by every head / layer)
    row = jax.lax.broadcasted_iota(jnp.int32, (Tt, Tt), 0)
    col = jax.lax.broadcasted_iota(jnp.int32, (Tt, Tt), 1)
    causal = col <= row

    cos_q = cosq_ref[...]
    sin_q = sinq_ref[...]
    cos_k = cosk_ref[...]
    sin_k = sink_ref[...]
    rot_q = rotq_ref[...]                                    # (Q_SIZE, Q_SIZE)
    rot_k = rotk_ref[...]                                    # (KV_SIZE, KV_SIZE)

    def rmsnorm(x, w):                                       # x, w already f32
        var = jnp.mean(x * x, axis=-1, keepdims=True)
        return x * jax.lax.rsqrt(var + eps) * w

    group = n_heads // n_kv_heads
    q_size = n_heads * head_dim
    kv_size = n_kv_heads * head_dim

    residual = h
    for l in range(n_layers):                                # unrolled (N_LAYERS=2)
        # ---- input_layernorm (fused residual add; layer 0: residual = hidden)
        if l == 0:
            residual = h
        else:
            residual = h + residual
        x = rmsnorm(residual, in_ln_ref[l].astype(f32))      # (T, H)

        # ---- qkv projection (+bias), all in VMEM
        qkv = jnp.dot(x, wqkv_ref[l], preferred_element_type=f32) + bqkv_ref[l]
        q = qkv[:, :q_size]                                  # (T, 128)
        k = qkv[:, q_size:q_size + kv_size]                  # (T, 64)
        v = qkv[:, q_size + kv_size:]                        # (T, 64)

        # ---- neox RoPE on lane-dense slabs: x*cos + rotate_half(x)*sin
        q = q * cos_q + jnp.dot(q, rot_q, preferred_element_type=f32) * sin_q
        k = k * cos_k + jnp.dot(k, rot_k, preferred_element_type=f32) * sin_k

        # ---- causal GQA attention; kv heads aliased by slicing (no repeat)
        outs = []
        for hd in range(n_heads):
            kv_h = hd // group
            qh = q[:, hd * head_dim:(hd + 1) * head_dim]     # (T, hd)
            kh = k[:, kv_h * head_dim:(kv_h + 1) * head_dim]
            vh = v[:, kv_h * head_dim:(kv_h + 1) * head_dim]
            s = jax.lax.dot_general(
                qh, kh, dimension_numbers=(((1,), (1,)), ((), ())),
                preferred_element_type=f32) * scale          # (T, T)
            s = jnp.where(causal, s, -1e30)
            m = jnp.max(s, axis=-1, keepdims=True)
            p = jnp.exp(s - m)
            p = p / jnp.sum(p, axis=-1, keepdims=True)
            outs.append(jnp.dot(p, vh, preferred_element_type=f32))
        attn = jnp.concatenate(outs, axis=-1)                # (T, 128) lane-dense

        # ---- o_proj (no bias)
        h_attn = jnp.dot(attn, wo_ref[l], preferred_element_type=f32)

        # ---- post_attention_layernorm (fused residual add)
        residual = h_attn + residual
        x2 = rmsnorm(residual, post_ln_ref[l].astype(f32))

        # ---- MLP: gate_up -> silu*mul -> down, all fused
        gu = jnp.dot(x2, wgu_ref[l], preferred_element_type=f32)   # (T, 2*INTER)
        g = gu[:, :inter]
        u = gu[:, inter:]
        act = g * jax.nn.sigmoid(g) * u
        h = jnp.dot(act, wdown_ref[l], preferred_element_type=f32) # (T, H)

    # ---- final norm
    out = rmsnorm(h + residual, final_ln_ref[...].astype(f32))
    o_ref[...] = out.astype(o_ref.dtype)


# ------------------------------- model wiring --------------------------------
def rope_tables(positions, head_dim, theta, n_heads, n_kv_heads):
    """Head-tiled full-width neox cos/sin tables: (T, NH*hd) and (T, NKV*hd)."""
    inv_freq = 1.0 / (theta ** (jnp.arange(0, head_dim, 2, dtype=jnp.float32) / head_dim))
    freqs = positions.astype(jnp.float32)[:, None] * inv_freq[None, :]   # (T, hd/2)
    cos = jnp.cos(freqs)
    sin = jnp.sin(freqs)
    cos_full = jnp.concatenate([cos, cos], axis=-1)                      # (T, hd)
    sin_full = jnp.concatenate([sin, sin], axis=-1)
    return (jnp.tile(cos_full, (1, n_heads)), jnp.tile(sin_full, (1, n_heads)),
            jnp.tile(cos_full, (1, n_kv_heads)), jnp.tile(sin_full, (1, n_kv_heads)))


def rope_rotation_matrix(n_heads, head_dim):
    """Block-diagonal matrix P with x @ P == per-head rotate_half(x) (neox)."""
    half = head_dim // 2
    eye = jnp.eye(half, dtype=jnp.float32)
    zero = jnp.zeros((half, half), jnp.float32)
    block = jnp.block([[zero, eye], [-eye, zero]])           # (hd, hd)
    return jnp.kron(jnp.eye(n_heads, dtype=jnp.float32), block)


@jax.jit
def tinyllm_forward(params, input_ids, positions):
    # TODO(synk): paged KV-cache write/read + AttentionMetadata are not modeled;
    # this is the prefill-only causal path (kv_caches ignored).
    h = params["embed"][input_ids]                           # glue: embedding gather
    Tt, H = h.shape

    cos_q, sin_q, cos_k, sin_k = rope_tables(positions, HEAD_DIM, ROPE_THETA,
                                             N_HEADS, N_KV_HEADS)
    rot_q = rope_rotation_matrix(N_HEADS, HEAD_DIM)
    rot_k = rope_rotation_matrix(N_KV_HEADS, HEAD_DIM)

    kern = functools.partial(
        _tinyllm_fused_kernel,
        n_layers=N_LAYERS, n_heads=N_HEADS, n_kv_heads=N_KV_HEADS,
        head_dim=HEAD_DIM, inter=INTER, eps=EPS, scale=HEAD_DIM ** -0.5)

    vmem_specs = [pl.BlockSpec(memory_space=pltpu.MemorySpace.VMEM) for _ in range(15)]

    return pl.pallas_call(
        kern,
        out_shape=jax.ShapeDtypeStruct((Tt, H), h.dtype),
        in_specs=vmem_specs,
        out_specs=pl.BlockSpec(memory_space=pltpu.MemorySpace.VMEM),
    )(h, cos_q, sin_q, cos_k, sin_k, rot_q, rot_k,
      params["in_ln"].reshape(N_LAYERS, 1, H),
      params["post_ln"].reshape(N_LAYERS, 1, H),
      params["wqkv"],
      params["bqkv"].reshape(N_LAYERS, 1, QKV_SIZE),
      params["wo"],
      params["w_gate_up"],
      params["w_down"],
      params["final_ln"].reshape(1, H))


def init_params(key):
    def w(k, shape, scale=0.05):
        return scale * jax.random.normal(k, shape, dtype=jnp.float32)

    k_embed, k_layers = jax.random.split(key)
    ks = jax.random.split(k_layers, 5)
    return {
        "embed": w(k_embed, (VOCAB, HIDDEN), 1.0 / (HIDDEN ** 0.5)),
        "final_ln": jnp.ones((HIDDEN,), jnp.float32),
        "in_ln": jnp.ones((N_LAYERS, HIDDEN), jnp.float32),
        "post_ln": jnp.ones((N_LAYERS, HIDDEN), jnp.float32),
        "wqkv": w(ks[0], (N_LAYERS, HIDDEN, QKV_SIZE)),
        "bqkv": w(ks[1], (N_LAYERS, QKV_SIZE)),
        "wo": w(ks[2], (N_LAYERS, Q_SIZE, HIDDEN)),
        "w_gate_up": w(ks[3], (N_LAYERS, HIDDEN, 2 * INTER)),
        "w_down": w(ks[4], (N_LAYERS, INTER, HIDDEN)),
    }


if __name__ == "__main__":
    key = jax.random.PRNGKey(0)
    k_params, k_ids = jax.random.split(key)
    params = init_params(k_params)
    input_ids = jax.random.randint(k_ids, (T,), 0, VOCAB, dtype=jnp.int32)
    positions = jnp.arange(T, dtype=jnp.int32)

    out = tinyllm_forward(params, input_ids, positions)
    out = jax.block_until_ready(out)

    assert out.shape == (T, HIDDEN), out.shape
    assert bool(jnp.all(jnp.isfinite(out)))
    print("KERNEL_OK")
</pallas_src>

<mosaic_0001>
module attributes {stable_mosaic.version = 11 : i64} {
  func.func @_tinyllm_fused_kernel(%arg0: memref<8x128xf32, #tpu.memory_space<vmem>>, %arg1: memref<8x128xf32, #tpu.memory_space<vmem>>, %arg2: memref<8x128xf32, #tpu.memory_space<vmem>>, %arg3: memref<8x64xf32, #tpu.memory_space<vmem>>, %arg4: memref<8x64xf32, #tpu.memory_space<vmem>>, %arg5: memref<128x128xf32, #tpu.memory_space<vmem>>, %arg6: memref<64x64xf32, #tpu.memory_space<vmem>>, %arg7: memref<2x1x128xf32, #tpu.memory_space<vmem>>, %arg8: memref<2x1x128xf32, #tpu.memory_space<vmem>>, %arg9: memref<2x128x256xf32, #tpu.memory_space<vmem>>, %arg10: memref<2x1x256xf32, #tpu.memory_space<vmem>>, %arg11: memref<2x128x128xf32, #tpu.memory_space<vmem>>, %arg12: memref<2x128x512xf32, #tpu.memory_space<vmem>>, %arg13: memref<2x256x128xf32, #tpu.memory_space<vmem>>, %arg14: memref<1x128xf32, #tpu.memory_space<vmem>>, %arg15: memref<8x128xf32, #tpu.memory_space<vmem>>) attributes {dimension_semantics = [], scalar_prefetch = 0 : i64, scratch_operands = 0 : i64, tpu.core_type = #tpu.core_type<tc>} {
    %c0 = arith.constant 0 : index
    %c0_0 = arith.constant 0 : index
    %0 = vector.load %arg0[%c0, %c0_0] : memref<8x128xf32, #tpu.memory_space<vmem>>, vector<8x128xf32>
    %1 = tpu.iota {dimensions = array<i32: 0>} : vector<8x8xi32>
    %2 = tpu.iota {dimensions = array<i32: 1>} : vector<8x8xi32>
    %3 = arith.cmpi sle, %2, %1 : vector<8x8xi32>
    %c0_1 = arith.constant 0 : index
    %c0_2 = arith.constant 0 : index
    %4 = vector.load %arg1[%c0_1, %c0_2] : memref<8x128xf32, #tpu.memory_space<vmem>>, vector<8x128xf32>
    %c0_3 = arith.constant 0 : index
    %c0_4 = arith.constant 0 : index
    %5 = vector.load %arg2[%c0_3, %c0_4] : memref<8x128xf32, #tpu.memory_space<vmem>>, vector<8x128xf32>
    %c0_5 = arith.constant 0 : index
    %c0_6 = arith.constant 0 : index
    %6 = vector.load %arg3[%c0_5, %c0_6] : memref<8x64xf32, #tpu.memory_space<vmem>>, vector<8x64xf32>
    %c0_7 = arith.constant 0 : index
    %c0_8 = arith.constant 0 : index
    %7 = vector.load %arg4[%c0_7, %c0_8] : memref<8x64xf32, #tpu.memory_space<vmem>>, vector<8x64xf32>
    %c0_9 = arith.constant 0 : index
    %c0_10 = arith.constant 0 : index
    %8 = vector.load %arg5[%c0_9, %c0_10] : memref<128x128xf32, #tpu.memory_space<vmem>>, vector<128x128xf32>
    %c0_11 = arith.constant 0 : index
    %c0_12 = arith.constant 0 : index
    %9 = vector.load %arg6[%c0_11, %c0_12] : memref<64x64xf32, #tpu.memory_space<vmem>>, vector<64x64xf32>
    %c0_13 = arith.constant 0 : index
    %c0_14 = arith.constant 0 : index
    %c0_15 = arith.constant 0 : index
    %10 = vector.load %arg7[%c0_13, %c0_14, %c0_15] : memref<2x1x128xf32, #tpu.memory_space<vmem>>, vector<1x1x128xf32>
    %11 = vector.shape_cast %10 : vector<1x1x128xf32> to vector<1x128xf32>
    %12 = arith.mulf %0, %0 : vector<8x128xf32>
    %cst = arith.constant dense<0.000000e+00> : vector<8xf32>
    %13 = vector.multi_reduction <add>, %12, %cst [1] : vector<8x128xf32> to vector<8xf32>
    %14 = vector.shape_cast %13 : vector<8xf32> to vector<8x1xf32>
    %cst_16 = arith.constant 1.280000e+02 : f32
    %15 = vector.broadcast %cst_16 : f32 to vector<8x1xf32>
    %16 = arith.divf %14, %15 : vector<8x1xf32>
    %cst_17 = arith.constant 9.99999997E-7 : f32
    %17 = vector.broadcast %cst_17 : f32 to vector<8x1xf32>
    %18 = arith.addf %16, %17 : vector<8x1xf32>
    %19 = math.rsqrt %18 : vector<8x1xf32>
    %20 = vector.broadcast %19 : vector<8x1xf32> to vector<8x128xf32>
    %21 = arith.mulf %0, %20 : vector<8x128xf32>
    %22 = vector.broadcast %11 : vector<1x128xf32> to vector<8x128xf32>
    %23 = arith.mulf %21, %22 : vector<8x128xf32>
    %c0_18 = arith.constant 0 : index
    %c0_19 = arith.constant 0 : index
    %c0_20 = arith.constant 0 : index
    %24 = vector.load %arg9[%c0_18, %c0_19, %c0_20] : memref<2x128x256xf32, #tpu.memory_space<vmem>>, vector<1x128x256xf32>
    %25 = vector.shape_cast %24 : vector<1x128x256xf32> to vector<128x256xf32>
    %cst_21 = arith.constant dense<0.000000e+00> : vector<8x256xf32>
    %26 = tpu.matmul %23, %25, %cst_21 {dimension_numbers = #tpu.dot_dimension_numbers<[1], [0], [0], [1], [0, 0, 1, 1], [], []>} : vector<8x128xf32>, vector<128x256xf32>, vector<8x256xf32> -> vector<8x256xf32>
    %c0_22 = arith.constant 0 : index
    %c0_23 = arith.constant 0 : index
    %c0_24 = arith.constant 0 : index
    %27 = vector.load %arg10[%c0_22, %c0_23, %c0_24] : memref<2x1x256xf32, #tpu.memory_space<vmem>>, vector<1x1x256xf32>
    %28 = vector.shape_cast %27 : vector<1x1x256xf32> to vector<1x256xf32>
    %29 = vector.broadcast %28 : vector<1x256xf32> to vector<8x256xf32>
    %30 = arith.addf %26, %29 : vector<8x256xf32>
    %31 = vector.extract_strided_slice %30 {offsets = [0, 0], sizes = [8, 128], strides = [1, 1]} : vector<8x256xf32> to vector<8x128xf32>
    %32 = vector.extract_strided_slice %30 {offsets = [0, 128], sizes = [8, 64], strides = [1, 1]} : vector<8x256xf32> to vector<8x64xf32>
    %33 = vector.extract_strided_slice %30 {offsets = [0, 192], sizes = [8, 64], strides = [1, 1]} : vector<8x256xf32> to vector<8x64xf32>
    %34 = arith.mulf %31, %4 : vector<8x128xf32>
    %cst_25 = arith.constant dense<0.000000e+00> : vector<8x128xf32>
    %35 = tpu.matmul %31, %8, %cst_25 {dimension_numbers = #tpu.dot_dimension_numbers<[1], [0], [0], [1], [0, 0, 1, 1], [], []>} : vector<8x128xf32>, vector<128x128xf32>, vector<8x128xf32> -> vector<8x128xf32>
    %36 = arith.mulf %35, %5 : vector<8x128xf32>
    %37 = arith.addf %34, %36 : vector<8x128xf32>
    %38 = arith.mulf %32, %6 : vector<8x64xf32>
    %cst_26 = arith.constant dense<0.000000e+00> : vector<8x64xf32>
    %39 = tpu.matmul %32, %9, %cst_26 {dimension_numbers = #tpu.dot_dimension_numbers<[1], [0], [0], [1], [0, 0, 1, 1], [], []>} : vector<8x64xf32>, vector<64x64xf32>, vector<8x64xf32> -> vector<8x64xf32>
    %40 = arith.mulf %39, %7 : vector<8x64xf32>
    %41 = arith.addf %38, %40 : vector<8x64xf32>
    %42 = vector.extract_strided_slice %37 {offsets = [0, 0], sizes = [8, 32], strides = [1, 1]} : vector<8x128xf32> to vector<8x32xf32>
    %43 = vector.extract_strided_slice %41 {offsets = [0, 0], sizes = [8, 32], strides = [1, 1]} : vector<8x64xf32> to vector<8x32xf32>
    %44 = vector.extract_strided_slice %33 {offsets = [0, 0], sizes = [8, 32], strides = [1, 1]} : vector<8x64xf32> to vector<8x32xf32>
    %cst_27 = arith.constant dense<0.000000e+00> : vector<8x8xf32>
    %45 = tpu.matmul %42, %43, %cst_27 {dimension_numbers = #tpu.dot_dimension_numbers<[1], [1], [0], [0], [0, 0, 1, 0], [], []>} : vector<8x32xf32>, vector<8x32xf32>, vector<8x8xf32> -> vector<8x8xf32>
    %cst_28 = arith.constant 0.176776692 : f32
    %46 = vector.broadcast %cst_28 : f32 to vector<8x8xf32>
    %47 = arith.mulf %45, %46 : vector<8x8xf32>
    %cst_29 = arith.constant -1.000000e+30 : f32
    %48 = vector.broadcast %cst_29 : f32 to vector<8x8xf32>
    %49 = arith.select %3, %47, %48 : vector<8x8xi1>, vector<8x8xf32>
    %cst_30 = arith.constant dense<0xFF800000> : vector<8xf32>
    %50 = vector.multi_reduction <maximumf>, %49, %cst_30 [1] : vector<8x8xf32> to vector<8xf32>
    %51 = vector.shape_cast %50 : vector<8xf32> to vector<8x1xf32>
    %52 = vector.broadcast %51 : vector<8x1xf32> to vector<8x8xf32>
    %53 = arith.subf %49, %52 : vector<8x8xf32>
    %54 = math.exp %53 : vector<8x8xf32>
    %cst_31 = arith.constant dense<0.000000e+00> : vector<8xf32>
    %55 = vector.multi_reduction <add>, %54, %cst_31 [1] : vector<8x8xf32> to vector<8xf32>
    %56 = vector.shape_cast %55 : vector<8xf32> to vector<8x1xf32>
    %57 = vector.broadcast %56 : vector<8x1xf32> to vector<8x8xf32>
    %58 = arith.divf %54, %57 : vector<8x8xf32>
    %cst_32 = arith.constant dense<0.000000e+00> : vector<8x32xf32>
    %59 = tpu.matmul %58, %44, %cst_32 {dimension_numbers = #tpu.dot_dimension_numbers<[1], [0], [0], [1], [0, 0, 1, 1], [], []>} : vector<8x8xf32>, vector<8x32xf32>, vector<8x32xf32> -> vector<8x32xf32>
    %60 = vector.extract_strided_slice %37 {offsets = [0, 32], sizes = [8, 32], strides = [1, 1]} : vector<8x128xf32> to vector<8x32xf32>
    %61 = vector.extract_strided_slice %41 {offsets = [0, 0], sizes = [8, 32], strides = [1, 1]} : vector<8x64xf32> to vector<8x32xf32>
    %62 = vector.extract_strided_slice %33 {offsets = [0, 0], sizes = [8, 32], strides = [1, 1]} : vector<8x64xf32> to vector<8x32xf32>
    %cst_33 = arith.constant dense<0.000000e+00> : vector<8x8xf32>
    %63 = tpu.matmul %60, %61, %cst_33 {dimension_numbers = #tpu.dot_dimension_numbers<[1], [1], [0], [0], [0, 0, 1, 0], [], []>} : vector<8x32xf32>, vector<8x32xf32>, vector<8x8xf32> -> vector<8x8xf32>
    %cst_34 = arith.constant 0.176776692 : f32
    %64 = vector.broadcast %cst_34 : f32 to vector<8x8xf32>
    %65 = arith.mulf %63, %64 : vector<8x8xf32>
    %cst_35 = arith.constant -1.000000e+30 : f32
    %66 = vector.broadcast %cst_35 : f32 to vector<8x8xf32>
    %67 = arith.select %3, %65, %66 : vector<8x8xi1>, vector<8x8xf32>
    %cst_36 = arith.constant dense<0xFF800000> : vector<8xf32>
    %68 = vector.multi_reduction <maximumf>, %67, %cst_36 [1] : vector<8x8xf32> to vector<8xf32>
    %69 = vector.shape_cast %68 : vector<8xf32> to vector<8x1xf32>
    %70 = vector.broadcast %69 : vector<8x1xf32> to vector<8x8xf32>
    %71 = arith.subf %67, %70 : vector<8x8xf32>
    %72 = math.exp %71 : vector<8x8xf32>
    %cst_37 = arith.constant dense<0.000000e+00> : vector<8xf32>
    %73 = vector.multi_reduction <add>, %72, %cst_37 [1] : vector<8x8xf32> to vector<8xf32>
    %74 = vector.shape_cast %73 : vector<8xf32> to vector<8x1xf32>
    %75 = vector.broadcast %74 : vector<8x1xf32> to vector<8x8xf32>
    %76 = arith.divf %72, %75 : vector<8x8xf32>
    %cst_38 = arith.constant dense<0.000000e+00> : vector<8x32xf32>
    %77 = tpu.matmul %76, %62, %cst_38 {dimension_numbers = #tpu.dot_dimension_numbers<[1], [0], [0], [1], [0, 0, 1, 1], [], []>} : vector<8x8xf32>, vector<8x32xf32>, vector<8x32xf32> -> vector<8x32xf32>
    %78 = vector.extract_strided_slice %37 {offsets = [0, 64], sizes = [8, 32], strides = [1, 1]} : vector<8x128xf32> to vector<8x32xf32>
    %79 = vector.extract_strided_slice %41 {offsets = [0, 32], sizes = [8, 32], strides = [1, 1]} : vector<8x64xf32> to vector<8x32xf32>
    %80 = vector.extract_strided_slice %33 {offsets = [0, 32], sizes = [8, 32], strides = [1, 1]} : vector<8x64xf32> to vector<8x32xf32>
    %cst_39 = arith.constant dense<0.000000e+00> : vector<8x8xf32>
    %81 = tpu.matmul %78, %79, %cst_39 {dimension_numbers = #tpu.dot_dimension_numbers<[1], [1], [0], [0], [0, 0, 1, 0], [], []>} : vector<8x32xf32>, vector<8x32xf32>, vector<8x8xf32> -> vector<8x8xf32>
    %cst_40 = arith.constant 0.176776692 : f32
    %82 = vector.broadcast %cst_40 : f32 to vector<8x8xf32>
    %83 = arith.mulf %81, %82 : vector<8x8xf32>
    %cst_41 = arith.constant -1.000000e+30 : f32
    %84 = vector.broadcast %cst_41 : f32 to vector<8x8xf32>
    %85 = arith.select %3, %83, %84 : vector<8x8xi1>, vector<8x8xf32>
    %cst_42 = arith.constant dense<0xFF800000> : vector<8xf32>
    %86 = vector.multi_reduction <maximumf>, %85, %cst_42 [1] : vector<8x8xf32> to vector<8xf32>
    %87 = vector.shape_cast %86 : vector<8xf32> to vector<8x1xf32>
    %88 = vector.broadcast %87 : vector<8x1xf32> to vector<8x8xf32>
    %89 = arith.subf %85, %88 : vector<8x8xf32>
    %90 = math.exp %89 : vector<8x8xf32>
    %cst_43 = arith.constant dense<0.000000e+00> : vector<8xf32>
    %91 = vector.multi_reduction <add>, %90, %cst_43 [1] : vector<8x8xf32> to vector<8xf32>
    %92 = vector.shape_cast %91 : vector<8xf32> to vector<8x1xf32>
    %93 = vector.broadcast %92 : vector<8x1xf32> to vector<8x8xf32>
    %94 = arith.divf %90, %93 : vector<8x8xf32>
    %cst_44 = arith.constant dense<0.000000e+00> : vector<8x32xf32>
    %95 = tpu.matmul %94, %80, %cst_44 {dimension_numbers = #tpu.dot_dimension_numbers<[1], [0], [0], [1], [0, 0, 1, 1], [], []>} : vector<8x8xf32>, vector<8x32xf32>, vector<8x32xf32> -> vector<8x32xf32>
    %96 = vector.extract_strided_slice %37 {offsets = [0, 96], sizes = [8, 32], strides = [1, 1]} : vector<8x128xf32> to vector<8x32xf32>
    %97 = vector.extract_strided_slice %41 {offsets = [0, 32], sizes = [8, 32], strides = [1, 1]} : vector<8x64xf32> to vector<8x32xf32>
    %98 = vector.extract_strided_slice %33 {offsets = [0, 32], sizes = [8, 32], strides = [1, 1]} : vector<8x64xf32> to vector<8x32xf32>
    %cst_45 = arith.constant dense<0.000000e+00> : vector<8x8xf32>
    %99 = tpu.matmul %96, %97, %cst_45 {dimension_numbers = #tpu.dot_dimension_numbers<[1], [1], [0], [0], [0, 0, 1, 0], [], []>} : vector<8x32xf32>, vector<8x32xf32>, vector<8x8xf32> -> vector<8x8xf32>
    %cst_46 = arith.constant 0.176776692 : f32
    %100 = vector.broadcast %cst_46 : f32 to vector<8x8xf32>
    %101 = arith.mulf %99, %100 : vector<8x8xf32>
    %cst_47 = arith.constant -1.000000e+30 : f32
    %102 = vector.broadcast %cst_47 : f32 to vector<8x8xf32>
    %103 = arith.select %3, %101, %102 : vector<8x8xi1>, vector<8x8xf32>
    %cst_48 = arith.constant dense<0xFF800000> : vector<8xf32>
    %104 = vector.multi_reduction <maximumf>, %103, %cst_48 [1] : vector<8x8xf32> to vector<8xf32>
    %105 = vector.shape_cast %104 : vector<8xf32> to vector<8x1xf32>
    %106 = vector.broadcast %105 : vector<8x1xf32> to vector<8x8xf32>
    %107 = arith.subf %103, %106 : vector<8x8xf32>
    %108 = math.exp %107 : vector<8x8xf32>
    %cst_49 = arith.constant dense<0.000000e+00> : vector<8xf32>
    %109 = vector.multi_reduction <add>, %108, %cst_49 [1] : vector<8x8xf32> to vector<8xf32>
    %110 = vector.shape_cast %109 : vector<8xf32> to vector<8x1xf32>
    %111 = vector.broadcast %110 : vector<8x1xf32> to vector<8x8xf32>
    %112 = arith.divf %108, %111 : vector<8x8xf32>
    %cst_50 = arith.constant dense<0.000000e+00> : vector<8x32xf32>
    %113 = tpu.matmul %112, %98, %cst_50 {dimension_numbers = #tpu.dot_dimension_numbers<[1], [0], [0], [1], [0, 0, 1, 1], [], []>} : vector<8x8xf32>, vector<8x32xf32>, vector<8x32xf32> -> vector<8x32xf32>
    %114 = tpu.concatenate %59, %77, %95, %113 in 1 : vector<8x32xf32>, vector<8x32xf32>, vector<8x32xf32>, vector<8x32xf32> -> vector<8x128xf32>
    %c0_51 = arith.constant 0 : index
    %c0_52 = arith.constant 0 : index
    %c0_53 = arith.constant 0 : index
    %115 = vector.load %arg11[%c0_51, %c0_52, %c0_53] : memref<2x128x128xf32, #tpu.memory_space<vmem>>, vector<1x128x128xf32>
    %116 = vector.shape_cast %115 : vector<1x128x128xf32> to vector<128x128xf32>
    %cst_54 = arith.constant dense<0.000000e+00> : vector<8x128xf32>
    %117 = tpu.matmul %114, %116, %cst_54 {dimension_numbers = #tpu.dot_dimension_numbers<[1], [0], [0], [1], [0, 0, 1, 1], [], []>} : vector<8x128xf32>, vector<128x128xf32>, vector<8x128xf32> -> vector<8x128xf32>
    %118 = arith.addf %117, %0 : vector<8x128xf32>
    %c0_55 = arith.constant 0 : index
    %c0_56 = arith.constant 0 : index
    %c0_57 = arith.constant 0 : index
    %119 = vector.load %arg8[%c0_55, %c0_56, %c0_57] : memref<2x1x128xf32, #tpu.memory_space<vmem>>, vector<1x1x128xf32>
    %120 = vector.shape_cast %119 : vector<1x1x128xf32> to vector<1x128xf32>
    %121 = arith.mulf %118, %118 : vector<8x128xf32>
    %cst_58 = arith.constant dense<0.000000e+00> : vector<8xf32>
    %122 = vector.multi_reduction <add>, %121, %cst_58 [1] : vector<8x128xf32> to vector<8xf32>
    %123 = vector.shape_cast %122 : vector<8xf32> to vector<8x1xf32>
    %cst_59 = arith.constant 1.280000e+02 : f32
    %124 = vector.broadcast %cst_59 : f32 to vector<8x1xf32>
    %125 = arith.divf %123, %124 : vector<8x1xf32>
    %cst_60 = arith.constant 9.99999997E-7 : f32
    %126 = vector.broadcast %cst_60 : f32 to vector<8x1xf32>
    %127 = arith.addf %125, %126 : vector<8x1xf32>
    %128 = math.rsqrt %127 : vector<8x1xf32>
    %129 = vector.broadcast %128 : vector<8x1xf32> to vector<8x128xf32>
    %130 = arith.mulf %118, %129 : vector<8x128xf32>
    %131 = vector.broadcast %120 : vector<1x128xf32> to vector<8x128xf32>
    %132 = arith.mulf %130, %131 : vector<8x128xf32>
    %c0_61 = arith.constant 0 : index
    %c0_62 = arith.constant 0 : index
    %c0_63 = arith.constant 0 : index
    %133 = vector.load %arg12[%c0_61, %c0_62, %c0_63] : memref<2x128x512xf32, #tpu.memory_space<vmem>>, vector<1x128x512xf32>
    %134 = vector.shape_cast %133 : vector<1x128x512xf32> to vector<128x512xf32>
    %cst_64 = arith.constant dense<0.000000e+00> : vector<8x512xf32>
    %135 = tpu.matmul %132, %134, %cst_64 {dimension_numbers = #tpu.dot_dimension_numbers<[1], [0], [0], [1], [0, 0, 1, 1], [], []>} : vector<8x128xf32>, vector<128x512xf32>, vector<8x512xf32> -> vector<8x512xf32>
    %136 = vector.extract_strided_slice %135 {offsets = [0, 0], sizes = [8, 256], strides = [1, 1]} : vector<8x512xf32> to vector<8x256xf32>
    %137 = vector.extract_strided_slice %135 {offsets = [0, 256], sizes = [8, 256], strides = [1, 1]} : vector<8x512xf32> to vector<8x256xf32>
    %138 = arith.negf %136 : vector<8x256xf32>
    %139 = math.exp %138 : vector<8x256xf32>
    %cst_65 = arith.constant 1.000000e+00 : f32
    %140 = vector.broadcast %cst_65 : f32 to vector<8x256xf32>
    %141 = arith.addf %140, %139 : vector<8x256xf32>
    %142 = arith.divf %140, %141 : vector<8x256xf32>
    %143 = arith.mulf %136, %142 : vector<8x256xf32>
    %144 = arith.mulf %143, %137 : vector<8x256xf32>
    %c0_66 = arith.constant 0 : index
    %c0_67 = arith.constant 0 : index
    %c0_68 = arith.constant 0 : index
    %145 = vector.load %arg13[%c0_66, %c0_67, %c0_68] : memref<2x256x128xf32, #tpu.memory_space<vmem>>, vector<1x256x128xf32>
    %146 = vector.shape_cast %145 : vector<1x256x128xf32> to vector<256x128xf32>
    %cst_69 = arith.constant dense<0.000000e+00> : vector<8x128xf32>
    %147 = tpu.matmul %144, %146, %cst_69 {dimension_numbers = #tpu.dot_dimension_numbers<[1], [0], [0], [1], [0, 0, 1, 1], [], []>} : vector<8x256xf32>, vector<256x128xf32>, vector<8x128xf32> -> vector<8x128xf32>
    %148 = arith.addf %147, %118 : vector<8x128xf32>
    %c1 = arith.constant 1 : index
    %c0_70 = arith.constant 0 : index
    %c0_71 = arith.constant 0 : index
    %149 = vector.load %arg7[%c1, %c0_70, %c0_71] : memref<2x1x128xf32, #tpu.memory_space<vmem>>, vector<1x1x128xf32>
    %150 = vector.shape_cast %149 : vector<1x1x128xf32> to vector<1x128xf32>
    %151 = arith.mulf %148, %148 : vector<8x128xf32>
    %cst_72 = arith.constant dense<0.000000e+00> : vector<8xf32>
    %152 = vector.multi_reduction <add>, %151, %cst_72 [1] : vector<8x128xf32> to vector<8xf32>
    %153 = vector.shape_cast %152 : vector<8xf32> to vector<8x1xf32>
    %cst_73 = arith.constant 1.280000e+02 : f32
    %154 = vector.broadcast %cst_73 : f32 to vector<8x1xf32>
    %155 = arith.divf %153, %154 : vector<8x1xf32>
    %cst_74 = arith.constant 9.99999997E-7 : f32
    %156 = vector.broadcast %cst_74 : f32 to vector<8x1xf32>
    %157 = arith.addf %155, %156 : vector<8x1xf32>
    %158 = math.rsqrt %157 : vector<8x1xf32>
    %159 = vector.broadcast %158 : vector<8x1xf32> to vector<8x128xf32>
    %160 = arith.mulf %148, %159 : vector<8x128xf32>
    %161 = vector.broadcast %150 : vector<1x128xf32> to vector<8x128xf32>
    %162 = arith.mulf %160, %161 : vector<8x128xf32>
    %c1_75 = arith.constant 1 : index
    %c0_76 = arith.constant 0 : index
    %c0_77 = arith.constant 0 : index
    %163 = vector.load %arg9[%c1_75, %c0_76, %c0_77] : memref<2x128x256xf32, #tpu.memory_space<vmem>>, vector<1x128x256xf32>
    %164 = vector.shape_cast %163 : vector<1x128x256xf32> to vector<128x256xf32>
    %cst_78 = arith.constant dense<0.000000e+00> : vector<8x256xf32>
    %165 = tpu.matmul %162, %164, %cst_78 {dimension_numbers = #tpu.dot_dimension_numbers<[1], [0], [0], [1], [0, 0, 1, 1], [], []>} : vector<8x128xf32>, vector<128x256xf32>, vector<8x256xf32> -> vector<8x256xf32>
    %c1_79 = arith.constant 1 : index
    %c0_80 = arith.constant 0 : index
    %c0_81 = arith.constant 0 : index
    %166 = vector.load %arg10[%c1_79, %c0_80, %c0_81] : memref<2x1x256xf32, #tpu.memory_space<vmem>>, vector<1x1x256xf32>
    %167 = vector.shape_cast %166 : vector<1x1x256xf32> to vector<1x256xf32>
    %168 = vector.broadcast %167 : vector<1x256xf32> to vector<8x256xf32>
    %169 = arith.addf %165, %168 : vector<8x256xf32>
    %170 = vector.extract_strided_slice %169 {offsets = [0, 0], sizes = [8, 128], strides = [1, 1]} : vector<8x256xf32> to vector<8x128xf32>
    %171 = vector.extract_strided_slice %169 {offsets = [0, 128], sizes = [8, 64], strides = [1, 1]} : vector<8x256xf32> to vector<8x64xf32>
    %172 = vector.extract_strided_slice %169 {offsets = [0, 192], sizes = [8, 64], strides = [1, 1]} : vector<8x256xf32> to vector<8x64xf32>
    %173 = arith.mulf %170, %4 : vector<8x128xf32>
    %cst_82 = arith.constant dense<0.000000e+00> : vector<8x128xf32>
    %174 = tpu.matmul %170, %8, %cst_82 {dimension_numbers = #tpu.dot_dimension_numbers<[1], [0], [0], [1], [0, 0, 1, 1], [], []>} : vector<8x128xf32>, vector<128x128xf32>, vector<8x128xf32> -> vector<8x128xf32>
    %175 = arith.mulf %174, %5 : vector<8x128xf32>
    %176 = arith.addf %173, %175 : vector<8x128xf32>
    %177 = arith.mulf %171, %6 : vector<8x64xf32>
    %cst_83 = arith.constant dense<0.000000e+00> : vector<8x64xf32>
    %178 = tpu.matmul %171, %9, %cst_83 {dimension_numbers = #tpu.dot_dimension_numbers<[1], [0], [0], [1], [0, 0, 1, 1], [], []>} : vector<8x64xf32>, vector<64x64xf32>, vector<8x64xf32> -> vector<8x64xf32>
    %179 = arith.mulf %178, %7 : vector<8x64xf32>
    %180 = arith.addf %177, %179 : vector<8x64xf32>
    %181 = vector.extract_strided_slice %176 {offsets = [0, 0], sizes = [8, 32], strides = [1, 1]} : vector<8x128xf32> to vector<8x32xf32>
    %182 = vector.extract_strided_slice %180 {offsets = [0, 0], sizes = [8, 32], strides = [1, 1]} : vector<8x64xf32> to vector<8x32xf32>
    %183 = vector.extract_strided_slice %172 {offsets = [0, 0], sizes = [8, 32], strides = [1, 1]} : vector<8x64xf32> to vector<8x32xf32>
    %cst_84 = arith.constant dense<0.000000e+00> : vector<8x8xf32>
    %184 = tpu.matmul %181, %182, %cst_84 {dimension_numbers = #tpu.dot_dimension_numbers<[1], [1], [0], [0], [0, 0, 1, 0], [], []>} : vector<8x32xf32>, vector<8x32xf32>, vector<8x8xf32> -> vector<8x8xf32>
    %cst_85 = arith.constant 0.176776692 : f32
    %185 = vector.broadcast %cst_85 : f32 to vector<8x8xf32>
    %186 = arith.mulf %184, %185 : vector<8x8xf32>
    %cst_86 = arith.constant -1.000000e+30 : f32
    %187 = vector.broadcast %cst_86 : f32 to vector<8x8xf32>
    %188 = arith.select %3, %186, %187 : vector<8x8xi1>, vector<8x8xf32>
    %cst_87 = arith.constant dense<0xFF800000> : vector<8xf32>
    %189 = vector.multi_reduction <maximumf>, %188, %cst_87 [1] : vector<8x8xf32> to vector<8xf32>
    %190 = vector.shape_cast %189 : vector<8xf32> to vector<8x1xf32>
    %191 = vector.broadcast %190 : vector<8x1xf32> to vector<8x8xf32>
    %192 = arith.subf %188, %191 : vector<8x8xf32>
    %193 = math.exp %192 : vector<8x8xf32>
    %cst_88 = arith.constant dense<0.000000e+00> : vector<8xf32>
    %194 = vector.multi_reduction <add>, %193, %cst_88 [1] : vector<8x8xf32> to vector<8xf32>
    %195 = vector.shape_cast %194 : vector<8xf32> to vector<8x1xf32>
    %196 = vector.broadcast %195 : vector<8x1xf32> to vector<8x8xf32>
    %197 = arith.divf %193, %196 : vector<8x8xf32>
    %cst_89 = arith.constant dense<0.000000e+00> : vector<8x32xf32>
    %198 = tpu.matmul %197, %183, %cst_89 {dimension_numbers = #tpu.dot_dimension_numbers<[1], [0], [0], [1], [0, 0, 1, 1], [], []>} : vector<8x8xf32>, vector<8x32xf32>, vector<8x32xf32> -> vector<8x32xf32>
    %199 = vector.extract_strided_slice %176 {offsets = [0, 32], sizes = [8, 32], strides = [1, 1]} : vector<8x128xf32> to vector<8x32xf32>
    %200 = vector.extract_strided_slice %180 {offsets = [0, 0], sizes = [8, 32], strides = [1, 1]} : vector<8x64xf32> to vector<8x32xf32>
    %201 = vector.extract_strided_slice %172 {offsets = [0, 0], sizes = [8, 32], strides = [1, 1]} : vector<8x64xf32> to vector<8x32xf32>
    %cst_90 = arith.constant dense<0.000000e+00> : vector<8x8xf32>
    %202 = tpu.matmul %199, %200, %cst_90 {dimension_numbers = #tpu.dot_dimension_numbers<[1], [1], [0], [0], [0, 0, 1, 0], [], []>} : vector<8x32xf32>, vector<8x32xf32>, vector<8x8xf32> -> vector<8x8xf32>
    %cst_91 = arith.constant 0.176776692 : f32
    %203 = vector.broadcast %cst_91 : f32 to vector<8x8xf32>
    %204 = arith.mulf %202, %203 : vector<8x8xf32>
    %cst_92 = arith.constant -1.000000e+30 : f32
    %205 = vector.broadcast %cst_92 : f32 to vector<8x8xf32>
    %206 = arith.select %3, %204, %205 : vector<8x8xi1>, vector<8x8xf32>
    %cst_93 = arith.constant dense<0xFF800000> : vector<8xf32>
    %207 = vector.multi_reduction <maximumf>, %206, %cst_93 [1] : vector<8x8xf32> to vector<8xf32>
    %208 = vector.shape_cast %207 : vector<8xf32> to vector<8x1xf32>
    %209 = vector.broadcast %208 : vector<8x1xf32> to vector<8x8xf32>
    %210 = arith.subf %206, %209 : vector<8x8xf32>
    %211 = math.exp %210 : vector<8x8xf32>
    %cst_94 = arith.constant dense<0.000000e+00> : vector<8xf32>
    %212 = vector.multi_reduction <add>, %211, %cst_94 [1] : vector<8x8xf32> to vector<8xf32>
    %213 = vector.shape_cast %212 : vector<8xf32> to vector<8x1xf32>
    %214 = vector.broadcast %213 : vector<8x1xf32> to vector<8x8xf32>
    %215 = arith.divf %211, %214 : vector<8x8xf32>
    %cst_95 = arith.constant dense<0.000000e+00> : vector<8x32xf32>
    %216 = tpu.matmul %215, %201, %cst_95 {dimension_numbers = #tpu.dot_dimension_numbers<[1], [0], [0], [1], [0, 0, 1, 1], [], []>} : vector<8x8xf32>, vector<8x32xf32>, vector<8x32xf32> -> vector<8x32xf32>
    %217 = vector.extract_strided_slice %176 {offsets = [0, 64], sizes = [8, 32], strides = [1, 1]} : vector<8x128xf32> to vector<8x32xf32>
    %218 = vector.extract_strided_slice %180 {offsets = [0, 32], sizes = [8, 32], strides = [1, 1]} : vector<8x64xf32> to vector<8x32xf32>
    %219 = vector.extract_strided_slice %172 {offsets = [0, 32], sizes = [8, 32], strides = [1, 1]} : vector<8x64xf32> to vector<8x32xf32>
    %cst_96 = arith.constant dense<0.000000e+00> : vector<8x8xf32>
    %220 = tpu.matmul %217, %218, %cst_96 {dimension_numbers = #tpu.dot_dimension_numbers<[1], [1], [0], [0], [0, 0, 1, 0], [], []>} : vector<8x32xf32>, vector<8x32xf32>, vector<8x8xf32> -> vector<8x8xf32>
    %cst_97 = arith.constant 0.176776692 : f32
    %221 = vector.broadcast %cst_97 : f32 to vector<8x8xf32>
    %222 = arith.mulf %220, %221 : vector<8x8xf32>
    %cst_98 = arith.constant -1.000000e+30 : f32
    %223 = vector.broadcast %cst_98 : f32 to vector<8x8xf32>
    %224 = arith.select %3, %222, %223 : vector<8x8xi1>, vector<8x8xf32>
    %cst_99 = arith.constant dense<0xFF800000> : vector<8xf32>
    %225 = vector.multi_reduction <maximumf>, %224, %cst_99 [1] : vector<8x8xf32> to vector<8xf32>
    %226 = vector.shape_cast %225 : vector<8xf32> to vector<8x1xf32>
    %227 = vector.broadcast %226 : vector<8x1xf32> to vector<8x8xf32>
    %228 = arith.subf %224, %227 : vector<8x8xf32>
    %229 = math.exp %228 : vector<8x8xf32>
    %cst_100 = arith.constant dense<0.000000e+00> : vector<8xf32>
    %230 = vector.multi_reduction <add>, %229, %cst_100 [1] : vector<8x8xf32> to vector<8xf32>
    %231 = vector.shape_cast %230 : vector<8xf32> to vector<8x1xf32>
    %232 = vector.broadcast %231 : vector<8x1xf32> to vector<8x8xf32>
    %233 = arith.divf %229, %232 : vector<8x8xf32>
    %cst_101 = arith.constant dense<0.000000e+00> : vector<8x32xf32>
    %234 = tpu.matmul %233, %219, %cst_101 {dimension_numbers = #tpu.dot_dimension_numbers<[1], [0], [0], [1], [0, 0, 1, 1], [], []>} : vector<8x8xf32>, vector<8x32xf32>, vector<8x32xf32> -> vector<8x32xf32>
    %235 = vector.extract_strided_slice %176 {offsets = [0, 96], sizes = [8, 32], strides = [1, 1]} : vector<8x128xf32> to vector<8x32xf32>
    %236 = vector.extract_strided_slice %180 {offsets = [0, 32], sizes = [8, 32], strides = [1, 1]} : vector<8x64xf32> to vector<8x32xf32>
    %237 = vector.extract_strided_slice %172 {offsets = [0, 32], sizes = [8, 32], strides = [1, 1]} : vector<8x64xf32> to vector<8x32xf32>
    %cst_102 = arith.constant dense<0.000000e+00> : vector<8x8xf32>
    %238 = tpu.matmul %235, %236, %cst_102 {dimension_numbers = #tpu.dot_dimension_numbers<[1], [1], [0], [0], [0, 0, 1, 0], [], []>} : vector<8x32xf32>, vector<8x32xf32>, vector<8x8xf32> -> vector<8x8xf32>
    %cst_103 = arith.constant 0.176776692 : f32
    %239 = vector.broadcast %cst_103 : f32 to vector<8x8xf32>
    %240 = arith.mulf %238, %239 : vector<8x8xf32>
    %cst_104 = arith.constant -1.000000e+30 : f32
    %241 = vector.broadcast %cst_104 : f32 to vector<8x8xf32>
    %242 = arith.select %3, %240, %241 : vector<8x8xi1>, vector<8x8xf32>
    %cst_105 = arith.constant dense<0xFF800000> : vector<8xf32>
    %243 = vector.multi_reduction <maximumf>, %242, %cst_105 [1] : vector<8x8xf32> to vector<8xf32>
    %244 = vector.shape_cast %243 : vector<8xf32> to vector<8x1xf32>
    %245 = vector.broadcast %244 : vector<8x1xf32> to vector<8x8xf32>
    %246 = arith.subf %242, %245 : vector<8x8xf32>
    %247 = math.exp %246 : vector<8x8xf32>
    %cst_106 = arith.constant dense<0.000000e+00> : vector<8xf32>
    %248 = vector.multi_reduction <add>, %247, %cst_106 [1] : vector<8x8xf32> to vector<8xf32>
    %249 = vector.shape_cast %248 : vector<8xf32> to vector<8x1xf32>
    %250 = vector.broadcast %249 : vector<8x1xf32> to vector<8x8xf32>
    %251 = arith.divf %247, %250 : vector<8x8xf32>
    %cst_107 = arith.constant dense<0.000000e+00> : vector<8x32xf32>
    %252 = tpu.matmul %251, %237, %cst_107 {dimension_numbers = #tpu.dot_dimension_numbers<[1], [0], [0], [1], [0, 0, 1, 1], [], []>} : vector<8x8xf32>, vector<8x32xf32>, vector<8x32xf32> -> vector<8x32xf32>
    %253 = tpu.concatenate %198, %216, %234, %252 in 1 : vector<8x32xf32>, vector<8x32xf32>, vector<8x32xf32>, vector<8x32xf32> -> vector<8x128xf32>
    %c1_108 = arith.constant 1 : index
    %c0_109 = arith.constant 0 : index
    %c0_110 = arith.constant 0 : index
    %254 = vector.load %arg11[%c1_108, %c0_109, %c0_110] : memref<2x128x128xf32, #tpu.memory_space<vmem>>, vector<1x128x128xf32>
    %255 = vector.shape_cast %254 : vector<1x128x128xf32> to vector<128x128xf32>
    %cst_111 = arith.constant dense<0.000000e+00> : vector<8x128xf32>
    %256 = tpu.matmul %253, %255, %cst_111 {dimension_numbers = #tpu.dot_dimension_numbers<[1], [0], [0], [1], [0, 0, 1, 1], [], []>} : vector<8x128xf32>, vector<128x128xf32>, vector<8x128xf32> -> vector<8x128xf32>
    %257 = arith.addf %256, %148 : vector<8x128xf32>
    %c1_112 = arith.constant 1 : index
    %c0_113 = arith.constant 0 : index
    %c0_114 = arith.constant 0 : index
    %258 = vector.load %arg8[%c1_112, %c0_113, %c0_114] : memref<2x1x128xf32, #tpu.memory_space<vmem>>, vector<1x1x128xf32>
    %259 = vector.shape_cast %258 : vector<1x1x128xf32> to vector<1x128xf32>
    %260 = arith.mulf %257, %257 : vector<8x128xf32>
    %cst_115 = arith.constant dense<0.000000e+00> : vector<8xf32>
    %261 = vector.multi_reduction <add>, %260, %cst_115 [1] : vector<8x128xf32> to vector<8xf32>
    %262 = vector.shape_cast %261 : vector<8xf32> to vector<8x1xf32>
    %cst_116 = arith.constant 1.280000e+02 : f32
    %263 = vector.broadcast %cst_116 : f32 to vector<8x1xf32>
    %264 = arith.divf %262, %263 : vector<8x1xf32>
    %cst_117 = arith.constant 9.99999997E-7 : f32
    %265 = vector.broadcast %cst_117 : f32 to vector<8x1xf32>
    %266 = arith.addf %264, %265 : vector<8x1xf32>
    %267 = math.rsqrt %266 : vector<8x1xf32>
    %268 = vector.broadcast %267 : vector<8x1xf32> to vector<8x128xf32>
    %269 = arith.mulf %257, %268 : vector<8x128xf32>
    %270 = vector.broadcast %259 : vector<1x128xf32> to vector<8x128xf32>
    %271 = arith.mulf %269, %270 : vector<8x128xf32>
    %c1_118 = arith.constant 1 : index
    %c0_119 = arith.constant 0 : index
    %c0_120 = arith.constant 0 : index
    %272 = vector.load %arg12[%c1_118, %c0_119, %c0_120] : memref<2x128x512xf32, #tpu.memory_space<vmem>>, vector<1x128x512xf32>
    %273 = vector.shape_cast %272 : vector<1x128x512xf32> to vector<128x512xf32>
    %cst_121 = arith.constant dense<0.000000e+00> : vector<8x512xf32>
    %274 = tpu.matmul %271, %273, %cst_121 {dimension_numbers = #tpu.dot_dimension_numbers<[1], [0], [0], [1], [0, 0, 1, 1], [], []>} : vector<8x128xf32>, vector<128x512xf32>, vector<8x512xf32> -> vector<8x512xf32>
    %275 = vector.extract_strided_slice %274 {offsets = [0, 0], sizes = [8, 256], strides = [1, 1]} : vector<8x512xf32> to vector<8x256xf32>
    %276 = vector.extract_strided_slice %274 {offsets = [0, 256], sizes = [8, 256], strides = [1, 1]} : vector<8x512xf32> to vector<8x256xf32>
    %277 = arith.negf %275 : vector<8x256xf32>
    %278 = math.exp %277 : vector<8x256xf32>
    %cst_122 = arith.constant 1.000000e+00 : f32
    %279 = vector.broadcast %cst_122 : f32 to vector<8x256xf32>
    %280 = arith.addf %279, %278 : vector<8x256xf32>
    %281 = arith.divf %279, %280 : vector<8x256xf32>
    %282 = arith.mulf %275, %281 : vector<8x256xf32>
    %283 = arith.mulf %282, %276 : vector<8x256xf32>
    %c1_123 = arith.constant 1 : index
    %c0_124 = arith.constant 0 : index
    %c0_125 = arith.constant 0 : index
    %284 = vector.load %arg13[%c1_123, %c0_124, %c0_125] : memref<2x256x128xf32, #tpu.memory_space<vmem>>, vector<1x256x128xf32>
    %285 = vector.shape_cast %284 : vector<1x256x128xf32> to vector<256x128xf32>
    %cst_126 = arith.constant dense<0.000000e+00> : vector<8x128xf32>
    %286 = tpu.matmul %283, %285, %cst_126 {dimension_numbers = #tpu.dot_dimension_numbers<[1], [0], [0], [1], [0, 0, 1, 1], [], []>} : vector<8x256xf32>, vector<256x128xf32>, vector<8x128xf32> -> vector<8x128xf32>
    %287 = arith.addf %286, %257 : vector<8x128xf32>
    %c0_127 = arith.constant 0 : index
    %c0_128 = arith.constant 0 : index
    %288 = vector.load %arg14[%c0_127, %c0_128] : memref<1x128xf32, #tpu.memory_space<vmem>>, vector<1x128xf32>
    %289 = arith.mulf %287, %287 : vector<8x128xf32>
    %cst_129 = arith.constant dense<0.000000e+00> : vector<8xf32>
    %290 = vector.multi_reduction <add>, %289, %cst_129 [1] : vector<8x128xf32> to vector<8xf32>
    %291 = vector.shape_cast %290 : vector<8xf32> to vector<8x1xf32>
    %cst_130 = arith.constant 1.280000e+02 : f32
    %292 = vector.broadcast %cst_130 : f32 to vector<8x1xf32>
    %293 = arith.divf %291, %292 : vector<8x1xf32>
    %cst_131 = arith.constant 9.99999997E-7 : f32
    %294 = vector.broadcast %cst_131 : f32 to vector<8x1xf32>
    %295 = arith.addf %293, %294 : vector<8x1xf32>
    %296 = math.rsqrt %295 : vector<8x1xf32>
    %297 = vector.broadcast %296 : vector<8x1xf32> to vector<8x128xf32>
    %298 = arith.mulf %287, %297 : vector<8x128xf32>
    %299 = vector.broadcast %288 : vector<1x128xf32> to vector<8x128xf32>
    %300 = arith.mulf %298, %299 : vector<8x128xf32>
    %c0_132 = arith.constant 0 : index
    %c0_133 = arith.constant 0 : index
    %301 = vector.load %arg15[%c0_132, %c0_133] : memref<8x128xf32, #tpu.memory_space<vmem>>, vector<8x128xf32>
    tpu.vector_store %arg15[%c0_132, %c0_133], %300 {strides = array<i32>} : memref<8x128xf32, #tpu.memory_space<vmem>>, vector<8x128xf32>,
    return
  }
}

</mosaic_0001>

<llo_original>
// kernel: tile.34
$region0: #{tile.34}
  %s0 = inlined_call_operand.vmem [shape: f32[8,2,32], index: 0, kind: input, shape index: {}]
  %s1 = inlined_call_operand.vmem [shape: f32[8,64], index: 1, kind: output, shape index: {}]
  $region1: #{tile.34} parent=0
    #allocation0 [shape = 'u8[32768]{0}', space=vmem, size = 0x8000, scoped, tag = 'scoped mem for input reshape']
    %s3 = ssub.s32 4, 1
    %s4 = scalar_lea.vmem %s0, 14
    %v5 = vld [vmem:[%s4] sm:%s3]
    %s6 = scalar_lea.vmem [#allocation0], 56
    %7 = vst [vmem:[%s6] sm:%s3] %v5
    %s8 = scalar_lea.vmem %s0, 12
    %v9 = vld [vmem:[%s8] sm:%s3]
    %s10 = scalar_lea.vmem [#allocation0], 48
    %11 = vst [vmem:[%s10] sm:%s3] %v9
    %s12 = scalar_lea.vmem %s0, 10
    %v13 = vld [vmem:[%s12] sm:%s3]
    %s14 = scalar_lea.vmem [#allocation0], 40
    %15 = vst [vmem:[%s14] sm:%s3] %v13
    %s16 = scalar_lea.vmem %s0, 8
    %v17 = vld [vmem:[%s16] sm:%s3]
    %s18 = scalar_lea.vmem [#allocation0], 32
    %19 = vst [vmem:[%s18] sm:%s3] %v17
    %s20 = scalar_lea.vmem %s0, 6
    %v21 = vld [vmem:[%s20] sm:%s3]
    %s22 = scalar_lea.vmem [#allocation0], 24
    %23 = vst [vmem:[%s22] sm:%s3] %v21
    %s24 = scalar_lea.vmem %s0, 4
    %v25 = vld [vmem:[%s24] sm:%s3]
    %s26 = scalar_lea.vmem [#allocation0], 16
    %27 = vst [vmem:[%s26] sm:%s3] %v25
    %s28 = scalar_lea.vmem %s0, 2
    %v29 = vld [vmem:[%s28] sm:%s3]
    %s30 = scalar_lea.vmem [#allocation0], 8
    %31 = vst [vmem:[%s30] sm:%s3] %v29
    %v32 = vld [vmem:[%s0] sm:%s3]
    %33 = vst [vmem:[#allocation0] sm:%s3] %v32
    %v34 = vld [vmem:[#allocation0] ss:$8 sm:$0xf]
    %v35 = vld [vmem:[#allocation0] ss:$8 sm:$0xf0]
    %vm36 = vcmask 1047556
    %v37 = vsel %vm36, %v35, %v34
    %vm38 = vcmask 261120
    %39 = vst.msk [vmem:[%s1] sm:$0xff] %vm38, %v37
    %s40 = scalar_lea.vmem [#allocation0], 1
    %v41 = vld [vmem:[%s40] ss:$8 sm:$0xf]
    %s42 = scalar_lea.vmem [#allocation0], 1
    %v43 = vld [vmem:[%s42] ss:$8 sm:$0xf0]
    %vm44 = vcmask 1047556
    %v45 = vsel %vm44, %v43, %v41
    %46 = vrot.lane.b32.xlu0 %v45, 32
    %v47 = vpop.permute.xlu0 %46
    %vm48 = vcmask 523520
    %49 = vst.msk [vmem:[%s1] sm:$0xff] %vm48, %v47

// kernel: tile.24
$region0: #{tile.24}
  %s0 = inlined_call_operand.vmem [shape: f32[8,4,32], index: 0, kind: input, shape index: {}]
  %s1 = inlined_call_operand.vmem [shape: f32[8,128], index: 1, kind: output, shape index: {}]
  $region1: #{tile.24} parent=0
    #allocation0 [shape = 'u8[32768]{0}', space=vmem, size = 0x8000, scoped, tag = 'scoped mem for input reshape']
    %s3 = ssub.s32 16, 1
    %s4 = scalar_lea.vmem %s0, 28
    %v5 = vld [vmem:[%s4] sm:%s3]
    %s6 = scalar_lea.vmem [#allocation0], 56
    %7 = vst [vmem:[%s6] sm:%s3] %v5
    %s8 = scalar_lea.vmem %s0, 24
    %v9 = vld [vmem:[%s8] sm:%s3]
    %s10 = scalar_lea.vmem [#allocation0], 48
    %11 = vst [vmem:[%s10] sm:%s3] %v9
    %s12 = scalar_lea.vmem %s0, 20
    %v13 = vld [vmem:[%s12] sm:%s3]
    %s14 = scalar_lea.vmem [#allocation0], 40
    %15 = vst [vmem:[%s14] sm:%s3] %v13
    %s16 = scalar_lea.vmem %s0, 16
    %v17 = vld [vmem:[%s16] sm:%s3]
    %s18 = scalar_lea.vmem [#allocation0], 32
    %19 = vst [vmem:[%s18] sm:%s3] %v17
    %s20 = scalar_lea.vmem %s0, 12
    %v21 = vld [vmem:[%s20] sm:%s3]
    %s22 = scalar_lea.vmem [#allocation0], 24
    %23 = vst [vmem:[%s22] sm:%s3] %v21
    %s24 = scalar_lea.vmem %s0, 8
    %v25 = vld [vmem:[%s24] sm:%s3]
    %s26 = scalar_lea.vmem [#allocation0], 16
    %27 = vst [vmem:[%s26] sm:%s3] %v25
    %s28 = scalar_lea.vmem %s0, 4
    %v29 = vld [vmem:[%s28] sm:%s3]
    %s30 = scalar_lea.vmem [#allocation0], 8
    %31 = vst [vmem:[%s30] sm:%s3] %v29
    %v32 = vld [vmem:[%s0] sm:%s3]
    %33 = vst [vmem:[#allocation0] sm:%s3] %v32
    %v34 = vld [vmem:[#allocation0] ss:$8 sm:$0xf]
    %v35 = vld [vmem:[#allocation0] ss:$8 sm:$0xf0]
    %vm36 = vcmask 1047556
    %v37 = vsel %vm36, %v35, %v34
    %vm38 = vcmask 261120
    %39 = vst.msk [vmem:[%s1] sm:$0xff] %vm38, %v37
    %s40 = scalar_lea.vmem [#allocation0], 3
    %v41 = vld [vmem:[%s40] ss:$8 sm:$0xf]
    %s42 = scalar_lea.vmem [#allocation0], 3
    %v43 = vld [vmem:[%s42] ss:$8 sm:$0xf0]
    %vm44 = vcmask 1047556
    %v45 = vsel %vm44, %v43, %v41
    %46 = vrot.lane.b32.xlu0 %v45, 96
    %v47 = vpop.permute.xlu0 %46
    %vm48 = vcmask 1048320
    %49 = vst.msk [vmem:[%s1] sm:$0xff] %vm48, %v47
    %s50 = scalar_lea.vmem [#allocation0], 2
    %v51 = vld [vmem:[%s50] ss:$8 sm:$0xf]
    %s52 = scalar_lea.vmem [#allocation0], 2
    %v53 = vld [vmem:[%s52] ss:$8 sm:$0xf0]
    %vm54 = vcmask 1047556
    %v55 = vsel %vm54, %v53, %v51
    %56 = vrot.lane.b32.xlu0 %v55, 64
    %v57 = vpop.permute.xlu0 %56
    %vm58 = vcmask 785920
    %59 = vst.msk [vmem:[%s1] sm:$0xff] %vm58, %v57
    %s60 = scalar_lea.vmem [#allocation0], 1
    %v61 = vld [vmem:[%s60] ss:$8 sm:$0xf]
    %s62 = scalar_lea.vmem [#allocation0], 1
    %v63 = vld [vmem:[%s62] ss:$8 sm:$0xf0]
    %vm64 = vcmask 1047556
    %v65 = vsel %vm64, %v63, %v61
    %66 = vrot.lane.b32.xlu0 %v65, 32
    %v67 = vpop.permute.xlu0 %66
    %vm68 = vcmask 523520
    %69 = vst.msk [vmem:[%s1] sm:$0xff] %vm68, %v67

// kernel: tinyllm_forward.1
$region0: #{tinyllm_forward.1}
  #allocation0 [shape = 'u32[]', space=smem, size = 0x4, offset = 0x4, fixed_abs, tag = 'smem constant byte address 0x4 - core index']
  #allocation1 [shape = 'u32[72,128]{1,0:T(1,128)}', space=vmem, size = 0x9000, scoped, tag = 'internal scratch']
  %s0 = inlined_call_operand.vmem [shape: f32[8,128], index: 0, kind: input, shape index: {}]
  %s1 = inlined_call_operand.vmem [shape: f32[8,128], index: 1, kind: input, shape index: {}]
  %s2 = inlined_call_operand.vmem [shape: f32[8,128], index: 2, kind: input, shape index: {}]
  %s3 = inlined_call_operand.vmem [shape: f32[8,64], index: 3, kind: input, shape index: {}]
  %s4 = inlined_call_operand.vmem [shape: f32[8,64], index: 4, kind: input, shape index: {}]
  %s5 = inlined_call_operand.vmem [shape: f32[128,128], index: 5, kind: input, shape index: {}]
  %s6 = inlined_call_operand.vmem [shape: f32[64,64], index: 6, kind: input, shape index: {}]
  %s7 = inlined_call_operand.vmem [shape: f32[2,1,128], index: 7, kind: input, shape index: {}]
  %s8 = inlined_call_operand.vmem [shape: f32[2,1,128], index: 8, kind: input, shape index: {}]
  %s9 = inlined_call_operand.vmem [shape: f32[2,128,256], index: 9, kind: input, shape index: {}]
  %s10 = inlined_call_operand.vmem [shape: f32[2,1,256], index: 10, kind: input, shape index: {}]
  %s11 = inlined_call_operand.vmem [shape: f32[2,128,128], index: 11, kind: input, shape index: {}]
  %s12 = inlined_call_operand.vmem [shape: f32[2,128,512], index: 12, kind: input, shape index: {}]
  %s13 = inlined_call_operand.hbm [shape: f32[2,256,128], index: 13, kind: input, shape index: {}]
  %s14 = inlined_call_operand.vmem [shape: f32[1,128], index: 14, kind: input, shape index: {}]
  %s15 = inlined_call_operand.hbm [shape: f32[8,128], index: 15, kind: output, shape index: {}]
  %s16 = sld [smem:[#allocation0]]
  $region74: #{tinyllm_forward.1} parent=0
    _
  %s18 = ssub.s32 1, %s16
  %s19 = scalar_select 0, %s18, %s16
  $region1: #{tinyllm_forward.1} parent=0
    #allocation2 [shape = 'u8[262144]{0}', space=vmem, size = 0x40000, scoped, tag = 'input window, operand 13, single buffered']
    #allocation3 [shape = 's32[1]{0}', space=sflag, size = 0x4, scoped, tag = 'scoped memory for tinyllm_forward.1']
    #allocation4 [shape = 's32[1]{0}', space=sflag, size = 0x4, scoped, tag = 'scoped memory for tinyllm_forward.1']
    #allocation5 [shape = 'u8[4096]{0}', space=vmem, size = 0x1000, scoped, tag = 'output window, operand 0, single buffered']
    %20 = vsyncpa [#allocation3], 0
    %21 = vsyncpa [#allocation4], 0
    // Predicated region
    $region2: #{tinyllm_forward.1} parent=1 // pred_check
      _
    $region3: #{tinyllm_forward.1} parent=1 // pred_check_branch
      %23 = sbr.rel (0) target = $region5
    $region4: #{tinyllm_forward.1} parent=1 // pred_region
      _
    $region5: #{tinyllm_forward.1} parent=1 // pred_fallthru
      _
    // Predicated region
    $region6: #{tinyllm_forward.1} parent=1 // pred_check
      _
    $region7: #{tinyllm_forward.1} parent=1 // pred_check_branch
      %25 = sbr.rel (0) target = $region9
    $region8: #{tinyllm_forward.1} parent=1 // pred_region
      _
    $region9: #{tinyllm_forward.1} parent=1 // pred_fallthru
      _
    // Predicated region
    $region10: #{tinyllm_forward.1} parent=1 // pred_check
      _
    $region11: #{tinyllm_forward.1} parent=1 // pred_check_branch
      %27 = sbr.rel (0) target = $region13
    $region12: #{tinyllm_forward.1} parent=1 // pred_region
      _
    $region13: #{tinyllm_forward.1} parent=1 // pred_fallthru
      _
    // Predicated region
    $region14: #{tinyllm_forward.1} parent=1 // pred_check
      _
    $region15: #{tinyllm_forward.1} parent=1 // pred_check_branch
      %29 = sbr.rel (0) target = $region17
    $region16: #{tinyllm_forward.1} parent=1 // pred_region
      _
    $region17: #{tinyllm_forward.1} parent=1 // pred_fallthru
      _
    // Predicated region
    $region18: #{tinyllm_forward.1} parent=1 // pred_check
      _
    $region19: #{tinyllm_forward.1} parent=1 // pred_check_branch
      %31 = sbr.rel (0) target = $region21
    $region20: #{tinyllm_forward.1} parent=1 // pred_region
      _
    $region21: #{tinyllm_forward.1} parent=1 // pred_fallthru
      _
    // Predicated region
    $region22: #{tinyllm_forward.1} parent=1 // pred_check
      _
    $region23: #{tinyllm_forward.1} parent=1 // pred_check_branch
      %33 = sbr.rel (0) target = $region25
    $region24: #{tinyllm_forward.1} parent=1 // pred_region
      _
    $region25: #{tinyllm_forward.1} parent=1 // pred_fallthru
      _
    // Predicated region
    $region26: #{tinyllm_forward.1} parent=1 // pred_check
      _
    $region27: #{tinyllm_forward.1} parent=1 // pred_check_branch
      %35 = sbr.rel (0) target = $region29
    $region28: #{tinyllm_forward.1} parent=1 // pred_region
      _
    $region29: #{tinyllm_forward.1} parent=1 // pred_fallthru
      _
    // Predicated region
    $region30: #{tinyllm_forward.1} parent=1 // pred_check
      _
    $region31: #{tinyllm_forward.1} parent=1 // pred_check_branch
      %37 = sbr.rel (0) target = $region33
    $region32: #{tinyllm_forward.1} parent=1 // pred_region
      _
    $region33: #{tinyllm_forward.1} parent=1 // pred_fallthru
      _
    // Predicated region
    $region34: #{tinyllm_forward.1} parent=1 // pred_check
      _
    $region35: #{tinyllm_forward.1} parent=1 // pred_check_branch
      %39 = sbr.rel (0) target = $region37
    $region36: #{tinyllm_forward.1} parent=1 // pred_region
      _
    $region37: #{tinyllm_forward.1} parent=1 // pred_fallthru
      _
    // Predicated region
    $region38: #{tinyllm_forward.1} parent=1 // pred_check
      _
    $region39: #{tinyllm_forward.1} parent=1 // pred_check_branch
      %41 = sbr.rel (0) target = $region41
    $region40: #{tinyllm_forward.1} parent=1 // pred_region
      _
    $region41: #{tinyllm_forward.1} parent=1 // pred_fallthru
      _
    // Predicated region
    $region42: #{tinyllm_forward.1} parent=1 // pred_check
      _
    $region43: #{tinyllm_forward.1} parent=1 // pred_check_branch
      %43 = sbr.rel (0) target = $region45
    $region44: #{tinyllm_forward.1} parent=1 // pred_region
      _
    $region45: #{tinyllm_forward.1} parent=1 // pred_fallthru
      _
    // Predicated region
    $region46: #{tinyllm_forward.1} parent=1 // pred_check
      _
    $region47: #{tinyllm_forward.1} parent=1 // pred_check_branch
      %45 = sbr.rel (0) target = $region49
    $region48: #{tinyllm_forward.1} parent=1 // pred_region
      _
    $region49: #{tinyllm_forward.1} parent=1 // pred_fallthru
      _
    // Predicated region
    $region50: #{tinyllm_forward.1} parent=1 // pred_check
      _
    $region51: #{tinyllm_forward.1} parent=1 // pred_check_branch
      %47 = sbr.rel (0) target = $region53
    $region52: #{tinyllm_forward.1} parent=1 // pred_region
      _
    $region53: #{tinyllm_forward.1} parent=1 // pred_fallthru
      _
    // Predicated region
    $region54: #{tinyllm_forward.1} parent=1 // pred_check
      _
    $region55: #{tinyllm_forward.1} parent=1 // pred_check_branch
      %49 = sbr.rel (0) target = $region57
    $region56: #{tinyllm_forward.1} parent=1 // pred_region
      %51 = vsyncadd [#allocation3], 0
      %s52 = sshll.u32 %s13, 4
      %s53 = int_to_ptr.hbm [resolvable:$true] %s52
      %s54 = sshll.u32 [#allocation2], 4
      %s55 = int_to_ptr.vmem [resolvable:$true] %s54
      %60 = dma.hbm_to_vmem [thread:$0]  %s53, 8192, %s55, [#allocation3], 128, 128, 8
    $region57: #{tinyllm_forward.1} parent=1 // pred_fallthru
      _
    // Predicated region
    $region58: #{tinyllm_forward.1} parent=1 // pred_check
      _
    $region59: #{tinyllm_forward.1} parent=1 // pred_check_branch
      %62 = sbr.rel (0) target = $region61
    $region60: #{tinyllm_forward.1} parent=1 // pred_region
      _
    $region61: #{tinyllm_forward.1} parent=1 // pred_fallthru
      _
    // Predicated region
    $region62: #{tinyllm_forward.1} parent=1 // pred_check
      _
    $region63: #{tinyllm_forward.1} parent=1 // pred_check_branch
      %64 = sbr.rel (0) target = $region65
    $region64: #{tinyllm_forward.1} parent=1 // pred_region
      %66 = dma.done [#allocation3], 8192
    $region65: #{tinyllm_forward.1} parent=1 // pred_fallthru
      _
    %v67 = vld [vmem:[%s0] sm:$0xff]
    %v68 = vlaneseq
    %v69 = vshrl.u32 %v68, 7
    %v70 = vlaneseq
    %v71 = vand.u32 %v70, 127
    %vm72 = vcmp.le.s32.totalorder %v71, %v69
    %v73 = vld [vmem:[%s1] sm:$0xff]
    %v74 = vld [vmem:[%s2] sm:$0xff]
    %v75 = vld [vmem:[%s3] sm:$0xff]
    %v76 = vld [vmem:[%s4] sm:$0xff]
    %v77 = vld [vmem:[%s5] sm:$0xff]
    %v78 = vld [vmem:[%s5 + $0x8] sm:$0xff]
    %v79 = vld [vmem:[%s5 + $0x10] sm:$0xff]
    %v80 = vld [vmem:[%s5 + $0x18] sm:$0xff]
    %v81 = vld [vmem:[%s5 + $0x20] sm:$0xff]
    %v82 = vld [vmem:[%s5 + $0x28] sm:$0xff]
    %v83 = vld [vmem:[%s5 + $0x30] sm:$0xff]
    %v84 = vld [vmem:[%s5 + $0x38] sm:$0xff]
    %v85 = vld [vmem:[%s5 + $0x40] sm:$0xff]
    %v86 = vld [vmem:[%s5 + $0x48] sm:$0xff]
    %v87 = vld [vmem:[%s5 + $0x50] sm:$0xff]
    %v88 = vld [vmem:[%s5 + $0x58] sm:$0xff]
    %v89 = vld [vmem:[%s5 + $0x60] sm:$0xff]
    %v90 = vld [vmem:[%s5 + $0x68] sm:$0xff]
    %v91 = vld [vmem:[%s5 + $0x70] sm:$0xff]
    %v92 = vld [vmem:[%s5 + $0x78] sm:$0xff]
    %v93 = vld [vmem:[%s6] sm:$0xff]
    %v94 = vld [vmem:[%s6 + $0x8] sm:$0xff]
    %v95 = vld [vmem:[%s6 + $0x10] sm:$0xff]
    %v96 = vld [vmem:[%s6 + $0x18] sm:$0xff]
    %v97 = vld [vmem:[%s6 + $0x20] sm:$0xff]
    %v98 = vld [vmem:[%s6 + $0x28] sm:$0xff]
    %v99 = vld [vmem:[%s6 + $0x30] sm:$0xff]
    %v100 = vld [vmem:[%s6 + $0x38] sm:$0xff]
    %v101 = vld [vmem:[%s7] sm:$0x1]
    %v102 = vmul.f32 %v67, %v67
    %103 = vadd.xlane.f32.xlu0 %v102
    %v104 = vpop.xlane.xlu0 %103
    %v105 = vrcp.pop 128.0
    %v106 = vmul.f32 128.0, %v105
    %v107 = vsub.f32 1.0, %v106
    %v108 = vmul.f32 %v105, %v107
    %v109 = vadd.f32 %v105, %v108
    %vm110 = vweird.f32 %v105
    %v111 = vsel %vm110, %v105, %v109
    %v112 = vmul.f32 %v104, %v111
    %v113 = vadd.f32 %v112, 1e-06
    %v114 = vrsqrt.pop %v113
    %v115 = vmul.f32 %v114, %v113
    %v116 = vmul.f32 %v115, %v114
    %v117 = vmul.f32 0.5, %v116
    %v118 = vsub.f32 1.5, %v117
    %v119 = vmul.f32 %v114, %v118
    %vm120 = vweird.f32 %v113
    %vm121 = vweird.f32 %v114
    %vm122 = vmor %vm120, %vm121
    %v123 = vsel %vm122, %v114, %v119
    %v124 = vmul.f32 %v67, %v123
    %v126 = vperm.slane %v101, 0
    %v128 = vmul.f32 %v124, %v126
    %v129 = vld [vmem:[%s9] sm:$0xff]
    %v130 = vld [vmem:[%s9 + $0x8] sm:$0xff]
    %v131 = vld [vmem:[%s9 + $0x10] sm:$0xff]
    %v132 = vld [vmem:[%s9 + $0x18] sm:$0xff]
    %v133 = vld [vmem:[%s9 + $0x20] sm:$0xff]
    %v134 = vld [vmem:[%s9 + $0x28] sm:$0xff]
    %v135 = vld [vmem:[%s9 + $0x30] sm:$0xff]
    %v136 = vld [vmem:[%s9 + $0x38] sm:$0xff]
    %v137 = vld [vmem:[%s9 + $0x40] sm:$0xff]
    %v138 = vld [vmem:[%s9 + $0x48] sm:$0xff]
    %v139 = vld [vmem:[%s9 + $0x50] sm:$0xff]
    %v140 = vld [vmem:[%s9 + $0x58] sm:$0xff]
    %v141 = vld [vmem:[%s9 + $0x60] sm:$0xff]
    %v142 = vld [vmem:[%s9 + $0x68] sm:$0xff]
    %v143 = vld [vmem:[%s9 + $0x70] sm:$0xff]
    %v144 = vld [vmem:[%s9 + $0x78] sm:$0xff]
    %v145 = vld [vmem:[%s9 + $0x80] sm:$0xff]
    %v146 = vld [vmem:[%s9 + $0x88] sm:$0xff]
    %v147 = vld [vmem:[%s9 + $0x90] sm:$0xff]
    %v148 = vld [vmem:[%s9 + $0x98] sm:$0xff]
    %v149 = vld [vmem:[%s9 + $0xa0] sm:$0xff]
    %v150 = vld [vmem:[%s9 + $0xa8] sm:$0xff]
    %v151 = vld [vmem:[%s9 + $0xb0] sm:$0xff]
    %v152 = vld [vmem:[%s9 + $0xb8] sm:$0xff]
    %v153 = vld [vmem:[%s9 + $0xc0] sm:$0xff]
    %v154 = vld [vmem:[%s9 + $0xc8] sm:$0xff]
    %v155 = vld [vmem:[%s9 + $0xd0] sm:$0xff]
    %v156 = vld [vmem:[%s9 + $0xd8] sm:$0xff]
    %v157 = vld [vmem:[%s9 + $0xe0] sm:$0xff]
    %v158 = vld [vmem:[%s9 + $0xe8] sm:$0xff]
    %v159 = vld [vmem:[%s9 + $0xf0] sm:$0xff]
    %v160 = vld [vmem:[%s9 + $0xf8] sm:$0xff]
    %v161 = vld [vmem:[%s10] sm:$0x3]
    %v163 = vperm.slane %v161, 0
    %v164 = vperm.slane %v161, 1
    %167 = vmatpush.msra.mxu0 %v159
    %168 = vmatpush.msra.mxu0 %v157
    %169 = vmatpush.msra.mxu0 %v155
    %170 = vmatpush.msra.mxu0 %v153
    %171 = vmatpush.msra.mxu0 %v151
    %172 = vmatpush.msra.mxu0 %v149
    %173 = vmatpush.msra.mxu0 %v147
    %174 = vmatpush.msra.mxu0 %v145
    %175 = vmatpush.msra.mxu0 %v143
    %176 = vmatpush.msra.mxu0 %v141
    %177 = vmatpush.msra.mxu0 %v139
    %178 = vmatpush.msra.mxu0 %v137
    %179 = vmatpush.msra.mxu0 %v135
    %180 = vmatpush.msra.mxu0 %v133
    %181 = vmatpush.msra.mxu0 %v131
    %182 = vmatpush.msra.mxu0 %v129
    %183 = vmatmul.f32.gmra.mxu0 %v128
    %v184 = vpop.f32.mrf.mxu0
    %v185 = vadd.f32 %v163, %v184
    %186 = vdwg.mxu0
    %187 = vmatpush.msra.mxu0 %v160
    %188 = vmatpush.msra.mxu0 %v158
    %189 = vmatpush.msra.mxu0 %v156
    %190 = vmatpush.msra.mxu0 %v154
    %191 = vmatpush.msra.mxu0 %v152
    %192 = vmatpush.msra.mxu0 %v150
    %193 = vmatpush.msra.mxu0 %v148
    %194 = vmatpush.msra.mxu0 %v146
    %195 = vmatpush.msra.mxu0 %v144
    %196 = vmatpush.msra.mxu0 %v142
    %197 = vmatpush.msra.mxu0 %v140
    %198 = vmatpush.msra.mxu0 %v138
    %199 = vmatpush.msra.mxu0 %v136
    %200 = vmatpush.msra.mxu0 %v134
    %201 = vmatpush.msra.mxu0 %v132
    %202 = vmatpush.msra.mxu0 %v130
    %203 = vmatmul.f32.gmra.mxu0 %v128
    %v204 = vpop.f32.mrf.mxu0
    %v205 = vadd.f32 %v164, %v204
    %206 = vdwg.mxu0
    %v207 = vmul.f32 %v185, %v73
    %208 = vmatpush.msra.mxu0 %v92
    %209 = vmatpush.msra.mxu0 %v91
    %210 = vmatpush.msra.mxu0 %v90
    %211 = vmatpush.msra.mxu0 %v89
    %212 = vmatpush.msra.mxu0 %v88
    %213 = vmatpush.msra.mxu0 %v87
    %214 = vmatpush.msra.mxu0 %v86
    %215 = vmatpush.msra.mxu0 %v85
    %216 = vmatpush.msra.mxu0 %v84
    %217 = vmatpush.msra.mxu0 %v83
    %218 = vmatpush.msra.mxu0 %v82
    %219 = vmatpush.msra.mxu0 %v81
    %220 = vmatpush.msra.mxu0 %v80
    %221 = vmatpush.msra.mxu0 %v79
    %222 = vmatpush.msra.mxu0 %v78
    %223 = vmatpush.msra.mxu0 %v77
    %224 = vmatmul.f32.gmra.mxu0 %v185
    %v225 = vpop.f32.mrf.mxu0
    %v226 = vadd.f32 0.0, %v225
    %227 = vdwg.mxu0
    %v228 = vmul.f32 %v226, %v74
    %v229 = vadd.f32 %v207, %v228
    %v230 = vmul.f32 %v205, %v75
    %vm231 = vcmask 523264
    %v233 = vsel %vm231, %v205, 0
    %235 = vmatpush.msra.mxu0 0.0
    %236 = vmatpush.msra.mxu0 0.0
    %237 = vmatpush.msra.mxu0 0.0
    %238 = vmatpush.msra.mxu0 0.0
    %239 = vmatpush.msra.mxu0 0.0
    %240 = vmatpush.msra.mxu0 0.0
    %241 = vmatpush.msra.mxu0 0.0
    %242 = vmatpush.msra.mxu0 0.0
    %243 = vmatpush.msra.mxu0 %v100
    %244 = vmatpush.msra.mxu0 %v99
    %245 = vmatpush.msra.mxu0 %v98
    %246 = vmatpush.msra.mxu0 %v97
    %247 = vmatpush.msra.mxu0 %v96
    %248 = vmatpush.msra.mxu0 %v95
    %249 = vmatpush.msra.mxu0 %v94
    %250 = vmatpush.msra.mxu0 %v93
    %251 = vmatmul.f32.gmra.mxu0 %v233
    %v252 = vpop.f32.mrf.mxu0
    %v253 = vadd.f32 0.0, %v252
    %254 = vdwg.mxu0
    %v255 = vmul.f32 %v253, %v76
    %v256 = vadd.f32 %v230, %v255
    %vm257 = vcmask 261120
    %v259 = vsel %vm257, %v229, 0
    %v262 = vsel %vm257, %v256, 0
    %264 = vmatpush.xpose.msra.mxu0 0.0
    %265 = vmatpush.xpose.msra.mxu0 0.0
    %266 = vmatpush.xpose.msra.mxu0 0.0
    %267 = vmatpush.xpose.msra.mxu0 0.0
    %268 = vmatpush.xpose.msra.mxu0 0.0
    %269 = vmatpush.xpose.msra.mxu0 0.0
    %270 = vmatpush.xpose.msra.mxu0 0.0
    %271 = vmatpush.xpose.msra.mxu0 0.0
    %272 = vmatpush.xpose.msra.mxu0 0.0
    %273 = vmatpush.xpose.msra.mxu0 0.0
    %274 = vmatpush.xpose.msra.mxu0 0.0
    %275 = vmatpush.xpose.msra.mxu0 0.0
    %276 = vmatpush.xpose.msra.mxu0 0.0
    %277 = vmatpush.xpose.msra.mxu0 0.0
    %278 = vmatpush.xpose.msra.mxu0 0.0
    %279 = vmatpush.xpose.msra.mxu0 %v262
    %280 = vmatmul.f32.gmra.mxu0 %v259
    %v281 = vpop.f32.mrf.mxu0
    %v282 = vadd.f32 0.0, %v281
    %283 = vdwg.mxu0
    %v284 = vmul.f32 %v282, 0.17677669
    %v285 = vsel %vm72, %v284, -1e+30
    %vm286 = vcmask 64512
    %v287 = vsel %vm286, %v285, -inf
    %288 = vmax.xlane.f32.xlu0 %v287
    %v289 = vpop.xlane.xlu0 %288
    %v290 = vsub.f32 %v285, %v289
    %v291 = vmul.f32 %v290, 1.442695
    %v292 = vpow.pop %v291
    %v293 = vsel %vm286, %v292, 0.0
    %294 = vadd.xlane.f32.xlu0 %v293
    %v295 = vpop.xlane.xlu0 %294
    %v296 = vrcp.pop %v295
    %v297 = vmul.f32 %v295, %v296
    %v298 = vsub.f32 1.0, %v297
    %v299 = vmul.f32 %v296, %v298
    %v300 = vadd.f32 %v296, %v299
    %vm301 = vweird.f32 %v295
    %vm302 = vweird.f32 %v296
    %vm303 = vmor %vm301, %vm302
    %v304 = vsel %vm303, %v296, %v300
    %v305 = vand.u32 2147483647, %v295
    %vm306 = vcmp.eq.f32.partialorder %v305, 8.507059e+37
    %v307 = vand.u32 %v295, 2147483648
    %v308 = vor.u32 1.1754944e-38, %v307
    %v309 = vsel %vm306, %v308, %v304
    %v310 = vmul.f32 %v292, %v309
    %311 = vrot.lane.b32.xlu0 %v205, 64
    %v312 = vpop.permute.xlu0 %311
    %v315 = vsel %vm286, %v310, 0
    %317 = vmatpush.msra.mxu0 0.0
    %318 = vmatpush.msra.mxu0 0.0
    %319 = vmatpush.msra.mxu0 0.0
    %320 = vmatpush.msra.mxu0 0.0
    %321 = vmatpush.msra.mxu0 0.0
    %322 = vmatpush.msra.mxu0 0.0
    %323 = vmatpush.msra.mxu0 0.0
    %324 = vmatpush.msra.mxu0 0.0
    %325 = vmatpush.msra.mxu0 0.0
    %326 = vmatpush.msra.mxu0 0.0
    %327 = vmatpush.msra.mxu0 0.0
    %328 = vmatpush.msra.mxu0 0.0
    %329 = vmatpush.msra.mxu0 0.0
    %330 = vmatpush.msra.mxu0 0.0
    %331 = vmatpush.msra.mxu0 0.0
    %332 = vmatpush.msra.mxu0 %v312
    %333 = vmatmul.f32.gmra.mxu0 %v315
    %v334 = vpop.f32.mrf.mxu0
    %v335 = vadd.f32 0.0, %v334
    %336 = vdwg.mxu0
    %337 = vrot.lane.b32.xlu0 %v229, 96
    %v338 = vpop.permute.xlu0 %337
    %v339 = vsel %vm257, %v338, 0
    %341 = vmatpush.xpose.msra.mxu0 0.0
    %342 = vmatpush.xpose.msra.mxu0 0.0
    %343 = vmatpush.xpose.msra.mxu0 0.0
    %344 = vmatpush.xpose.msra.mxu0 0.0
    %345 = vmatpush.xpose.msra.mxu0 0.0
    %346 = vmatpush.xpose.msra.mxu0 0.0
    %347 = vmatpush.xpose.msra.mxu0 0.0
    %348 = vmatpush.xpose.msra.mxu0 0.0
    %349 = vmatpush.xpose.msra.mxu0 0.0
    %350 = vmatpush.xpose.msra.mxu0 0.0
    %351 = vmatpush.xpose.msra.mxu0 0.0
    %352 = vmatpush.xpose.msra.mxu0 0.0
    %353 = vmatpush.xpose.msra.mxu0 0.0
    %354 = vmatpush.xpose.msra.mxu0 0.0
    %355 = vmatpush.xpose.msra.mxu0 0.0
    %356 = vmatpush.xpose.msra.mxu0 %v262
    %357 = vmatmul.f32.gmra.mxu0 %v339
    %v358 = vpop.f32.mrf.mxu0
    %v359 = vadd.f32 0.0, %v358
    %360 = vdwg.mxu0
    %v361 = vmul.f32 %v359, 0.17677669
    %v362 = vsel %vm72, %v361, -1e+30
    %v363 = vsel %vm286, %v362, -inf
    %364 = vmax.xlane.f32.xlu0 %v363
    %v365 = vpop.xlane.xlu0 %364
    %v366 = vsub.f32 %v362, %v365
    %v367 = vmul.f32 %v366, 1.442695
    %v368 = vpow.pop %v367
    %v369 = vsel %vm286, %v368, 0.0
    %370 = vadd.xlane.f32.xlu0 %v369
    %v371 = vpop.xlane.xlu0 %370
    %v372 = vrcp.pop %v371
    %v373 = vmul.f32 %v371, %v372
    %v374 = vsub.f32 1.0, %v373
    %v375 = vmul.f32 %v372, %v374
    %v376 = vadd.f32 %v372, %v375
    %vm377 = vweird.f32 %v371
    %vm378 = vweird.f32 %v372
    %vm379 = vmor %vm377, %vm378
    %v380 = vsel %vm379, %v372, %v376
    %v381 = vand.u32 2147483647, %v371
    %vm382 = vcmp.eq.f32.partialorder %v381, 8.507059e+37
    %v383 = vand.u32 %v371, 2147483648
    %v384 = vor.u32 1.1754944e-38, %v383
    %v385 = vsel %vm382, %v384, %v380
    %v386 = vmul.f32 %v368, %v385
    %v388 = vsel %vm286, %v386, 0
    %390 = vmatpush.msra.mxu0 0.0
    %391 = vmatpush.msra.mxu0 0.0
    %392 = vmatpush.msra.mxu0 0.0
    %393 = vmatpush.msra.mxu0 0.0
    %394 = vmatpush.msra.mxu0 0.0
    %395 = vmatpush.msra.mxu0 0.0
    %396 = vmatpush.msra.mxu0 0.0
    %397 = vmatpush.msra.mxu0 0.0
    %398 = vmatpush.msra.mxu0 0.0
    %399 = vmatpush.msra.mxu0 0.0
    %400 = vmatpush.msra.mxu0 0.0
    %401 = vmatpush.msra.mxu0 0.0
    %402 = vmatpush.msra.mxu0 0.0
    %403 = vmatpush.msra.mxu0 0.0
    %404 = vmatpush.msra.mxu0 0.0
    %405 = vmatpush.msra.mxu0 %v312
    %406 = vmatmul.f32.gmra.mxu0 %v388
    %v407 = vpop.f32.mrf.mxu0
    %v408 = vadd.f32 0.0, %v407
    %409 = vdwg.mxu0
    %410 = vrot.lane.b32.xlu0 %v229, 64
    %v411 = vpop.permute.xlu0 %410
    %412 = vrot.lane.b32.xlu0 %v256, 96
    %v413 = vpop.permute.xlu0 %412
    %v414 = vsel %vm257, %v411, 0
    %v416 = vsel %vm257, %v413, 0
    %418 = vmatpush.xpose.msra.mxu0 0.0
    %419 = vmatpush.xpose.msra.mxu0 0.0
    %420 = vmatpush.xpose.msra.mxu0 0.0
    %421 = vmatpush.xpose.msra.mxu0 0.0
    %422 = vmatpush.xpose.msra.mxu0 0.0
    %423 = vmatpush.xpose.msra.mxu0 0.0
    %424 = vmatpush.xpose.msra.mxu0 0.0
    %425 = vmatpush.xpose.msra.mxu0 0.0
    %426 = vmatpush.xpose.msra.mxu0 0.0
    %427 = vmatpush.xpose.msra.mxu0 0.0
    %428 = vmatpush.xpose.msra.mxu0 0.0
    %429 = vmatpush.xpose.msra.mxu0 0.0
    %430 = vmatpush.xpose.msra.mxu0 0.0
    %431 = vmatpush.xpose.msra.mxu0 0.0
    %432 = vmatpush.xpose.msra.mxu0 0.0
    %433 = vmatpush.xpose.msra.mxu0 %v416
    %434 = vmatmul.f32.gmra.mxu0 %v414
    %v435 = vpop.f32.mrf.mxu0
    %v436 = vadd.f32 0.0, %v435
    %437 = vdwg.mxu0
    %v438 = vmul.f32 %v436, 0.17677669
    %v439 = vsel %vm72, %v438, -1e+30
    %v440 = vsel %vm286, %v439, -inf
    %441 = vmax.xlane.f32.xlu0 %v440
    %v442 = vpop.xlane.xlu0 %441
    %v443 = vsub.f32 %v439, %v442
    %v444 = vmul.f32 %v443, 1.442695
    %v445 = vpow.pop %v444
    %v446 = vsel %vm286, %v445, 0.0
    %447 = vadd.xlane.f32.xlu0 %v446
    %v448 = vpop.xlane.xlu0 %447
    %v449 = vrcp.pop %v448
    %v450 = vmul.f32 %v448, %v449
    %v451 = vsub.f32 1.0, %v450
    %v452 = vmul.f32 %v449, %v451
    %v453 = vadd.f32 %v449, %v452
    %vm454 = vweird.f32 %v448
    %vm455 = vweird.f32 %v449
    %vm456 = vmor %vm454, %vm455
    %v457 = vsel %vm456, %v449, %v453
    %v458 = vand.u32 2147483647, %v448
    %vm459 = vcmp.eq.f32.partialorder %v458, 8.507059e+37
    %v460 = vand.u32 %v448, 2147483648
    %v461 = vor.u32 1.1754944e-38, %v460
    %v462 = vsel %vm459, %v461, %v457
    %v463 = vmul.f32 %v445, %v462
    %464 = vrot.lane.b32.xlu0 %v205, 32
    %v465 = vpop.permute.xlu0 %464
    %v468 = vsel %vm286, %v463, 0
    %470 = vmatpush.msra.mxu0 0.0
    %471 = vmatpush.msra.mxu0 0.0
    %472 = vmatpush.msra.mxu0 0.0
    %473 = vmatpush.msra.mxu0 0.0
    %474 = vmatpush.msra.mxu0 0.0
    %475 = vmatpush.msra.mxu0 0.0
    %476 = vmatpush.msra.mxu0 0.0
    %477 = vmatpush.msra.mxu0 0.0
    %478 = vmatpush.msra.mxu0 0.0
    %479 = vmatpush.msra.mxu0 0.0
    %480 = vmatpush.msra.mxu0 0.0
    %481 = vmatpush.msra.mxu0 0.0
    %482 = vmatpush.msra.mxu0 0.0
    %483 = vmatpush.msra.mxu0 0.0
    %484 = vmatpush.msra.mxu0 0.0
    %485 = vmatpush.msra.mxu0 %v465
    %486 = vmatmul.f32.gmra.mxu0 %v468
    %v487 = vpop.f32.mrf.mxu0
    %v488 = vadd.f32 0.0, %v487
    %489 = vdwg.mxu0
    %490 = vrot.lane.b32.xlu0 %v229, 32
    %v491 = vpop.permute.xlu0 %490
    %v492 = vsel %vm257, %v491, 0
    %494 = vmatpush.xpose.msra.mxu0 0.0
    %495 = vmatpush.xpose.msra.mxu0 0.0
    %496 = vmatpush.xpose.msra.mxu0 0.0
    %497 = vmatpush.xpose.msra.mxu0 0.0
    %498 = vmatpush.xpose.msra.mxu0 0.0
    %499 = vmatpush.xpose.msra.mxu0 0.0
    %500 = vmatpush.xpose.msra.mxu0 0.0
    %501 = vmatpush.xpose.msra.mxu0 0.0
    %502 = vmatpush.xpose.msra.mxu0 0.0
    %503 = vmatpush.xpose.msra.mxu0 0.0
    %504 = vmatpush.xpose.msra.mxu0 0.0
    %505 = vmatpush.xpose.msra.mxu0 0.0
    %506 = vmatpush.xpose.msra.mxu0 0.0
    %507 = vmatpush.xpose.msra.mxu0 0.0
    %508 = vmatpush.xpose.msra.mxu0 0.0
    %509 = vmatpush.xpose.msra.mxu0 %v416
    %510 = vmatmul.f32.gmra.mxu0 %v492
    %v511 = vpop.f32.mrf.mxu0
    %v512 = vadd.f32 0.0, %v511
    %513 = vdwg.mxu0
    %v514 = vmul.f32 %v512, 0.17677669
    %v515 = vsel %vm72, %v514, -1e+30
    %v516 = vsel %vm286, %v515, -inf
    %517 = vmax.xlane.f32.xlu0 %v516
    %v518 = vpop.xlane.xlu0 %517
    %v519 = vsub.f32 %v515, %v518
    %v520 = vmul.f32 %v519, 1.442695
    %v521 = vpow.pop %v520
    %v522 = vsel %vm286, %v521, 0.0
    %523 = vadd.xlane.f32.xlu0 %v522
    %v524 = vpop.xlane.xlu0 %523
    %v525 = vrcp.pop %v524
    %v526 = vmul.f32 %v524, %v525
    %v527 = vsub.f32 1.0, %v526
    %v528 = vmul.f32 %v525, %v527
    %v529 = vadd.f32 %v525, %v528
    %vm530 = vweird.f32 %v524
    %vm531 = vweird.f32 %v525
    %vm532 = vmor %vm530, %vm531
    %v533 = vsel %vm532, %v525, %v529
    %v534 = vand.u32 2147483647, %v524
    %vm535 = vcmp.eq.f32.partialorder %v534, 8.507059e+37
    %v536 = vand.u32 %v524, 2147483648
    %v537 = vor.u32 1.1754944e-38, %v536
    %v538 = vsel %vm535, %v537, %v533
    %v539 = vmul.f32 %v521, %v538
    %v541 = vsel %vm286, %v539, 0
    %543 = vmatpush.msra.mxu0 0.0
    %544 = vmatpush.msra.mxu0 0.0
    %545 = vmatpush.msra.mxu0 0.0
    %546 = vmatpush.msra.mxu0 0.0
    %547 = vmatpush.msra.mxu0 0.0
    %548 = vmatpush.msra.mxu0 0.0
    %549 = vmatpush.msra.mxu0 0.0
    %550 = vmatpush.msra.mxu0 0.0
    %551 = vmatpush.msra.mxu0 0.0
    %552 = vmatpush.msra.mxu0 0.0
    %553 = vmatpush.msra.mxu0 0.0
    %554 = vmatpush.msra.mxu0 0.0
    %555 = vmatpush.msra.mxu0 0.0
    %556 = vmatpush.msra.mxu0 0.0
    %557 = vmatpush.msra.mxu0 0.0
    %558 = vmatpush.msra.mxu0 %v465
    %559 = vmatmul.f32.gmra.mxu0 %v541
    %v560 = vpop.f32.mrf.mxu0
    %v561 = vadd.f32 0.0, %v560
    %562 = vdwg.mxu0
    %564 = vrot.lane.b32.xlu0 %v408, 32
    %v565 = vpop.permute.xlu0 %564
    %568 = vrot.lane.b32.xlu0 %v488, 64
    %v569 = vpop.permute.xlu0 %568
    %572 = vrot.lane.b32.xlu0 %v561, 96
    %v573 = vpop.permute.xlu0 %572
    %v575 = vsel %vm257, %v335, %v565
    %v576 = vsel %vm231, %v575, %v569
    %vm577 = vcmask 785408
    %v578 = vsel %vm577, %v576, %v573
    %v579 = vld [vmem:[%s11] sm:$0xff]
    %v580 = vld [vmem:[%s11 + $0x8] sm:$0xff]
    %v581 = vld [vmem:[%s11 + $0x10] sm:$0xff]
    %v582 = vld [vmem:[%s11 + $0x18] sm:$0xff]
    %v583 = vld [vmem:[%s11 + $0x20] sm:$0xff]
    %v584 = vld [vmem:[%s11 + $0x28] sm:$0xff]
    %v585 = vld [vmem:[%s11 + $0x30] sm:$0xff]
    %v586 = vld [vmem:[%s11 + $0x38] sm:$0xff]
    %v587 = vld [vmem:[%s11 + $0x40] sm:$0xff]
    %v588 = vld [vmem:[%s11 + $0x48] sm:$0xff]
    %v589 = vld [vmem:[%s11 + $0x50] sm:$0xff]
    %v590 = vld [vmem:[%s11 + $0x58] sm:$0xff]
    %v591 = vld [vmem:[%s11 + $0x60] sm:$0xff]
    %v592 = vld [vmem:[%s11 + $0x68] sm:$0xff]
    %v593 = vld [vmem:[%s11 + $0x70] sm:$0xff]
    %v594 = vld [vmem:[%s11 + $0x78] sm:$0xff]
    %595 = vmatpush.msra.mxu0 %v594
    %596 = vmatpush.msra.mxu0 %v593
    %597 = vmatpush.msra.mxu0 %v592
    %598 = vmatpush.msra.mxu0 %v591
    %599 = vmatpush.msra.mxu0 %v590
    %600 = vmatpush.msra.mxu0 %v589
    %601 = vmatpush.msra.mxu0 %v588
    %602 = vmatpush.msra.mxu0 %v587
    %603 = vmatpush.msra.mxu0 %v586
    %604 = vmatpush.msra.mxu0 %v585
    %605 = vmatpush.msra.mxu0 %v584
    %606 = vmatpush.msra.mxu0 %v583
    %607 = vmatpush.msra.mxu0 %v582
    %608 = vmatpush.msra.mxu0 %v581
    %609 = vmatpush.msra.mxu0 %v580
    %610 = vmatpush.msra.mxu0 %v579
    %611 = vmatmul.f32.gmra.mxu0 %v578
    %v612 = vpop.f32.mrf.mxu0
    %v613 = vadd.f32 %v67, %v612
    %614 = vdwg.mxu0
    %v615 = vld [vmem:[%s8] sm:$0x1]
    %v616 = vmul.f32 %v613, %v613
    %617 = vadd.xlane.f32.xlu0 %v616
    %v618 = vpop.xlane.xlu0 %617
    %v619 = vmul.f32 %v618, %v111
    %v620 = vadd.f32 %v619, 1e-06
    %v621 = vrsqrt.pop %v620
    %v622 = vmul.f32 %v621, %v620
    %v623 = vmul.f32 %v622, %v621
    %v624 = vmul.f32 0.5, %v623
    %v625 = vsub.f32 1.5, %v624
    %v626 = vmul.f32 %v621, %v625
    %vm627 = vweird.f32 %v620
    %vm628 = vweird.f32 %v621
    %vm629 = vmor %vm627, %vm628
    %v630 = vsel %vm629, %v621, %v626
    %v631 = vmul.f32 %v613, %v630
    %v633 = vperm.slane %v615, 0
    %v635 = vmul.f32 %v631, %v633
    %v636 = vld [vmem:[%s12] sm:$0xff]
    %v637 = vld [vmem:[%s12 + $0x8] sm:$0xff]
    %v638 = vld [vmem:[%s12 + $0x10] sm:$0xff]
    %v639 = vld [vmem:[%s12 + $0x18] sm:$0xff]
    %v640 = vld [vmem:[%s12 + $0x20] sm:$0xff]
    %v641 = vld [vmem:[%s12 + $0x28] sm:$0xff]
    %v642 = vld [vmem:[%s12 + $0x30] sm:$0xff]
    %v643 = vld [vmem:[%s12 + $0x38] sm:$0xff]
    %v644 = vld [vmem:[%s12 + $0x40] sm:$0xff]
    %v645 = vld [vmem:[%s12 + $0x48] sm:$0xff]
    %v646 = vld [vmem:[%s12 + $0x50] sm:$0xff]
    %v647 = vld [vmem:[%s12 + $0x58] sm:$0xff]
    %v648 = vld [vmem:[%s12 + $0x60] sm:$0xff]
    %v649 = vld [vmem:[%s12 + $0x68] sm:$0xff]
    %v650 = vld [vmem:[%s12 + $0x70] sm:$0xff]
    %v651 = vld [vmem:[%s12 + $0x78] sm:$0xff]
    %v652 = vld [vmem:[%s12 + $0x80] sm:$0xff]
    %v653 = vld [vmem:[%s12 + $0x88] sm:$0xff]
    %v654 = vld [vmem:[%s12 + $0x90] sm:$0xff]
    %v655 = vld [vmem:[%s12 + $0x98] sm:$0xff]
    %v656 = vld [vmem:[%s12 + $0xa0] sm:$0xff]
    %v657 = vld [vmem:[%s12 + $0xa8] sm:$0xff]
    %v658 = vld [vmem:[%s12 + $0xb0] sm:$0xff]
    %v659 = vld [vmem:[%s12 + $0xb8] sm:$0xff]
    %v660 = vld [vmem:[%s12 + $0xc0] sm:$0xff]
    %v661 = vld [vmem:[%s12 + $0xc8] sm:$0xff]
    %v662 = vld [vmem:[%s12 + $0xd0] sm:$0xff]
    %v663 = vld [vmem:[%s12 + $0xd8] sm:$0xff]
    %v664 = vld [vmem:[%s12 + $0xe0] sm:$0xff]
    %v665 = vld [vmem:[%s12 + $0xe8] sm:$0xff]
    %v666 = vld [vmem:[%s12 + $0xf0] sm:$0xff]
    %v667 = vld [vmem:[%s12 + $0xf8] sm:$0xff]
    %v668 = vld [vmem:[%s12 + $0x100] sm:$0xff]
    %v669 = vld [vmem:[%s12 + $0x108] sm:$0xff]
    %v670 = vld [vmem:[%s12 + $0x110] sm:$0xff]
    %v671 = vld [vmem:[%s12 + $0x118] sm:$0xff]
    %v672 = vld [vmem:[%s12 + $0x120] sm:$0xff]
    %v673 = vld [vmem:[%s12 + $0x128] sm:$0xff]
    %v674 = vld [vmem:[%s12 + $0x130] sm:$0xff]
    %v675 = vld [vmem:[%s12 + $0x138] sm:$0xff]
    %v676 = vld [vmem:[%s12 + $0x140] sm:$0xff]
    %v677 = vld [vmem:[%s12 + $0x148] sm:$0xff]
    %v678 = vld [vmem:[%s12 + $0x150] sm:$0xff]
    %v679 = vld [vmem:[%s12 + $0x158] sm:$0xff]
    %v680 = vld [vmem:[%s12 + $0x160] sm:$0xff]
    %v681 = vld [vmem:[%s12 + $0x168] sm:$0xff]
    %v682 = vld [vmem:[%s12 + $0x170] sm:$0xff]
    %v683 = vld [vmem:[%s12 + $0x178] sm:$0xff]
    %v684 = vld [vmem:[%s12 + $0x180] sm:$0xff]
    %v685 = vld [vmem:[%s12 + $0x188] sm:$0xff]
    %v686 = vld [vmem:[%s12 + $0x190] sm:$0xff]
    %v687 = vld [vmem:[%s12 + $0x198] sm:$0xff]
    %v688 = vld [vmem:[%s12 + $0x1a0] sm:$0xff]
    %v689 = vld [vmem:[%s12 + $0x1a8] sm:$0xff]
    %v690 = vld [vmem:[%s12 + $0x1b0] sm:$0xff]
    %v691 = vld [vmem:[%s12 + $0x1b8] sm:$0xff]
    %v692 = vld [vmem:[%s12 + $0x1c0] sm:$0xff]
    %v693 = vld [vmem:[%s12 + $0x1c8] sm:$0xff]
    %v694 = vld [vmem:[%s12 + $0x1d0] sm:$0xff]
    %v695 = vld [vmem:[%s12 + $0x1d8] sm:$0xff]
    %v696 = vld [vmem:[%s12 + $0x1e0] sm:$0xff]
    %v697 = vld [vmem:[%s12 + $0x1e8] sm:$0xff]
    %v698 = vld [vmem:[%s12 + $0x1f0] sm:$0xff]
    %v699 = vld [vmem:[%s12 + $0x1f8] sm:$0xff]
    %700 = vmatpush.msra.mxu0 %v696
    %701 = vmatpush.msra.mxu0 %v692
    %702 = vmatpush.msra.mxu0 %v688
    %703 = vmatpush.msra.mxu0 %v684
    %704 = vmatpush.msra.mxu0 %v680
    %705 = vmatpush.msra.mxu0 %v676
    %706 = vmatpush.msra.mxu0 %v672
    %707 = vmatpush.msra.mxu0 %v668
    %708 = vmatpush.msra.mxu0 %v664
    %709 = vmatpush.msra.mxu0 %v660
    %710 = vmatpush.msra.mxu0 %v656
    %711 = vmatpush.msra.mxu0 %v652
    %712 = vmatpush.msra.mxu0 %v648
    %713 = vmatpush.msra.mxu0 %v644
    %714 = vmatpush.msra.mxu0 %v640
    %715 = vmatpush.msra.mxu0 %v636
    %716 = vmatmul.f32.gmra.mxu0 %v635
    %v717 = vpop.f32.mrf.mxu0
    %v718 = vadd.f32 0.0, %v717
    %719 = vdwg.mxu0
    %720 = vmatpush.msra.mxu0 %v697
    %721 = vmatpush.msra.mxu0 %v693
    %722 = vmatpush.msra.mxu0 %v689
    %723 = vmatpush.msra.mxu0 %v685
    %724 = vmatpush.msra.mxu0 %v681
    %725 = vmatpush.msra.mxu0 %v677
    %726 = vmatpush.msra.mxu0 %v673
    %727 = vmatpush.msra.mxu0 %v669
    %728 = vmatpush.msra.mxu0 %v665
    %729 = vmatpush.msra.mxu0 %v661
    %730 = vmatpush.msra.mxu0 %v657
    %731 = vmatpush.msra.mxu0 %v653
    %732 = vmatpush.msra.mxu0 %v649
    %733 = vmatpush.msra.mxu0 %v645
    %734 = vmatpush.msra.mxu0 %v641
    %735 = vmatpush.msra.mxu0 %v637
    %736 = vmatmul.f32.gmra.mxu0 %v635
    %v737 = vpop.f32.mrf.mxu0
    %v738 = vadd.f32 0.0, %v737
    %739 = vdwg.mxu0
    %740 = vmatpush.msra.mxu0 %v698
    %741 = vmatpush.msra.mxu0 %v694
    %742 = vmatpush.msra.mxu0 %v690
    %743 = vmatpush.msra.mxu0 %v686
    %744 = vmatpush.msra.mxu0 %v682
    %745 = vmatpush.msra.mxu0 %v678
    %746 = vmatpush.msra.mxu0 %v674
    %747 = vmatpush.msra.mxu0 %v670
    %748 = vmatpush.msra.mxu0 %v666
    %749 = vmatpush.msra.mxu0 %v662
    %750 = vmatpush.msra.mxu0 %v658
    %751 = vmatpush.msra.mxu0 %v654
    %752 = vmatpush.msra.mxu0 %v650
    %753 = vmatpush.msra.mxu0 %v646
    %754 = vmatpush.msra.mxu0 %v642
    %755 = vmatpush.msra.mxu0 %v638
    %756 = vmatmul.f32.gmra.mxu0 %v635
    %v757 = vpop.f32.mrf.mxu0
    %v758 = vadd.f32 0.0, %v757
    %759 = vdwg.mxu0
    %760 = vmatpush.msra.mxu0 %v699
    %761 = vmatpush.msra.mxu0 %v695
    %762 = vmatpush.msra.mxu0 %v691
    %763 = vmatpush.msra.mxu0 %v687
    %764 = vmatpush.msra.mxu0 %v683
    %765 = vmatpush.msra.mxu0 %v679
    %766 = vmatpush.msra.mxu0 %v675
    %767 = vmatpush.msra.mxu0 %v671
    %768 = vmatpush.msra.mxu0 %v667
    %769 = vmatpush.msra.mxu0 %v663
    %770 = vmatpush.msra.mxu0 %v659
    %771 = vmatpush.msra.mxu0 %v655
    %772 = vmatpush.msra.mxu0 %v651
    %773 = vmatpush.msra.mxu0 %v647
    %774 = vmatpush.msra.mxu0 %v643
    %775 = vmatpush.msra.mxu0 %v639
    %776 = vmatmul.f32.gmra.mxu0 %v635
    %v777 = vpop.f32.mrf.mxu0
    %v778 = vadd.f32 0.0, %v777
    %779 = vdwg.mxu0
    %v780 = vxor.u32 %v718, 2147483648
    %v781 = vxor.u32 %v738, 2147483648
    %v782 = vmul.f32 %v780, 1.442695
    %v783 = vpow.pop %v782
    %v784 = vmul.f32 %v781, 1.442695
    %v785 = vpow.pop %v784
    %v786 = vadd.f32 %v783, 1.0
    %v787 = vadd.f32 %v785, 1.0
    %v788 = vrcp.pop %v786
    %v789 = vmul.f32 %v786, %v788
    %v790 = vsub.f32 1.0, %v789
    %v791 = vmul.f32 %v788, %v790
    %v792 = vadd.f32 %v788, %v791
    %vm793 = vweird.f32 %v786
    %vm794 = vweird.f32 %v788
    %vm795 = vmor %vm793, %vm794
    %v796 = vsel %vm795, %v788, %v792
    %v797 = vand.u32 2147483647, %v786
    %vm798 = vcmp.eq.f32.partialorder %v797, 8.507059e+37
    %v799 = vand.u32 %v786, 2147483648
    %v800 = vor.u32 1.1754944e-38, %v799
    %v801 = vsel %vm798, %v800, %v796
    %v802 = vmul.f32 1.0, %v801
    %v803 = vrcp.pop %v787
    %v804 = vmul.f32 %v787, %v803
    %v805 = vsub.f32 1.0, %v804
    %v806 = vmul.f32 %v803, %v805
    %v807 = vadd.f32 %v803, %v806
    %vm808 = vweird.f32 %v787
    %vm809 = vweird.f32 %v803
    %vm810 = vmor %vm808, %vm809
    %v811 = vsel %vm810, %v803, %v807
    %v812 = vand.u32 2147483647, %v787
    %vm813 = vcmp.eq.f32.partialorder %v812, 8.507059e+37
    %v814 = vand.u32 %v787, 2147483648
    %v815 = vor.u32 1.1754944e-38, %v814
    %v816 = vsel %vm813, %v815, %v811
    %v817 = vmul.f32 1.0, %v816
    %v818 = vmul.f32 %v718, %v802
    %v819 = vmul.f32 %v738, %v817
    %v820 = vmul.f32 %v818, %v758
    %v821 = vmul.f32 %v819, %v778
    %v822 = vld [vmem:[#allocation2] sm:$0xff]
    %v823 = vld [vmem:[#allocation2 + $0x8] sm:$0xff]
    %v824 = vld [vmem:[#allocation2 + $0x10] sm:$0xff]
    %v825 = vld [vmem:[#allocation2 + $0x18] sm:$0xff]
    %v826 = vld [vmem:[#allocation2 + $0x20] sm:$0xff]
    %v827 = vld [vmem:[#allocation2 + $0x28] sm:$0xff]
    %v828 = vld [vmem:[#allocation2 + $0x30] sm:$0xff]
    %v829 = vld [vmem:[#allocation2 + $0x38] sm:$0xff]
    %v830 = vld [vmem:[#allocation2 + $0x40] sm:$0xff]
    %v831 = vld [vmem:[#allocation2 + $0x48] sm:$0xff]
    %v832 = vld [vmem:[#allocation2 + $0x50] sm:$0xff]
    %v833 = vld [vmem:[#allocation2 + $0x58] sm:$0xff]
    %v834 = vld [vmem:[#allocation2 + $0x60] sm:$0xff]
    %v835 = vld [vmem:[#allocation2 + $0x68] sm:$0xff]
    %v836 = vld [vmem:[#allocation2 + $0x70] sm:$0xff]
    %v837 = vld [vmem:[#allocation2 + $0x78] sm:$0xff]
    %v838 = vld [vmem:[#allocation2 + $0x80] sm:$0xff]
    %v839 = vld [vmem:[#allocation2 + $0x88] sm:$0xff]
    %v840 = vld [vmem:[#allocation2 + $0x90] sm:$0xff]
    %v841 = vld [vmem:[#allocation2 + $0x98] sm:$0xff]
    %v842 = vld [vmem:[#allocation2 + $0xa0] sm:$0xff]
    %v843 = vld [vmem:[#allocation2 + $0xa8] sm:$0xff]
    %v844 = vld [vmem:[#allocation2 + $0xb0] sm:$0xff]
    %v845 = vld [vmem:[#allocation2 + $0xb8] sm:$0xff]
    %v846 = vld [vmem:[#allocation2 + $0xc0] sm:$0xff]
    %v847 = vld [vmem:[#allocation2 + $0xc8] sm:$0xff]
    %v848 = vld [vmem:[#allocation2 + $0xd0] sm:$0xff]
    %v849 = vld [vmem:[#allocation2 + $0xd8] sm:$0xff]
    %v850 = vld [vmem:[#allocation2 + $0xe0] sm:$0xff]
    %v851 = vld [vmem:[#allocation2 + $0xe8] sm:$0xff]
    %v852 = vld [vmem:[#allocation2 + $0xf0] sm:$0xff]
    %v853 = vld [vmem:[#allocation2 + $0xf8] sm:$0xff]
    %854 = vmatpush.msra.mxu0 %v837
    %855 = vmatpush.msra.mxu0 %v836
    %856 = vmatpush.msra.mxu0 %v835
    %857 = vmatpush.msra.mxu0 %v834
    %858 = vmatpush.msra.mxu0 %v833
    %859 = vmatpush.msra.mxu0 %v832
    %860 = vmatpush.msra.mxu0 %v831
    %861 = vmatpush.msra.mxu0 %v830
    %862 = vmatpush.msra.mxu0 %v829
    %863 = vmatpush.msra.mxu0 %v828
    %864 = vmatpush.msra.mxu0 %v827
    %865 = vmatpush.msra.mxu0 %v826
    %866 = vmatpush.msra.mxu0 %v825
    %867 = vmatpush.msra.mxu0 %v824
    %868 = vmatpush.msra.mxu0 %v823
    %869 = vmatpush.msra.mxu0 %v822
    %870 = vmatmul.f32.gmra.mxu0 %v820
    %v871 = vpop.f32.mrf.mxu0
    %v872 = vadd.f32 %v613, %v871
    %873 = vdwg.mxu0
    %874 = vmatpush.msra.mxu0 %v853
    %875 = vmatpush.msra.mxu0 %v852
    %876 = vmatpush.msra.mxu0 %v851
    %877 = vmatpush.msra.mxu0 %v850
    %878 = vmatpush.msra.mxu0 %v849
    %879 = vmatpush.msra.mxu0 %v848
    %880 = vmatpush.msra.mxu0 %v847
    %881 = vmatpush.msra.mxu0 %v846
    %882 = vmatpush.msra.mxu0 %v845
    %883 = vmatpush.msra.mxu0 %v844
    %884 = vmatpush.msra.mxu0 %v843
    %885 = vmatpush.msra.mxu0 %v842
    %886 = vmatpush.msra.mxu0 %v841
    %887 = vmatpush.msra.mxu0 %v840
    %888 = vmatpush.msra.mxu0 %v839
    %889 = vmatpush.msra.mxu0 %v838
    %890 = vmatmul.f32.gmra.mxu0 %v821
    %v891 = vpop.f32.mrf.mxu0
    %v892 = vadd.f32 %v872, %v891
    %893 = vdwg.mxu0
    %s894 = scalar_lea.vmem %s7, 1
    %v895 = vld [vmem:[%s894] sm:$0x1]
    %v896 = vmul.f32 %v892, %v892
    %897 = vadd.xlane.f32.xlu0 %v896
    %v898 = vpop.xlane.xlu0 %897
    %v899 = vmul.f32 %v898, %v111
    %v900 = vadd.f32 %v899, 1e-06
    %v901 = vrsqrt.pop %v900
    %v902 = vmul.f32 %v901, %v900
    %v903 = vmul.f32 %v902, %v901
    %v904 = vmul.f32 0.5, %v903
    %v905 = vsub.f32 1.5, %v904
    %v906 = vmul.f32 %v901, %v905
    %vm907 = vweird.f32 %v900
    %vm908 = vweird.f32 %v901
    %vm909 = vmor %vm907, %vm908
    %v910 = vsel %vm909, %v901, %v906
    %v911 = vmul.f32 %v892, %v910
    %v913 = vperm.slane %v895, 0
    %v915 = vmul.f32 %v911, %v913
    %s916 = scalar_lea.vmem %s9, 256
    %v917 = vld [vmem:[%s916] sm:$0xff]
    %v918 = vld [vmem:[%s916 + $0x8] sm:$0xff]
    %v919 = vld [vmem:[%s916 + $0x10] sm:$0xff]
    %v920 = vld [vmem:[%s916 + $0x18] sm:$0xff]
    %v921 = vld [vmem:[%s916 + $0x20] sm:$0xff]
    %v922 = vld [vmem:[%s916 + $0x28] sm:$0xff]
    %v923 = vld [vmem:[%s916 + $0x30] sm:$0xff]
    %v924 = vld [vmem:[%s916 + $0x38] sm:$0xff]
    %v925 = vld [vmem:[%s916 + $0x40] sm:$0xff]
    %v926 = vld [vmem:[%s916 + $0x48] sm:$0xff]
    %v927 = vld [vmem:[%s916 + $0x50] sm:$0xff]
    %v928 = vld [vmem:[%s916 + $0x58] sm:$0xff]
    %v929 = vld [vmem:[%s916 + $0x60] sm:$0xff]
    %v930 = vld [vmem:[%s916 + $0x68] sm:$0xff]
    %v931 = vld [vmem:[%s916 + $0x70] sm:$0xff]
    %v932 = vld [vmem:[%s916 + $0x78] sm:$0xff]
    %v933 = vld [vmem:[%s916 + $0x80] sm:$0xff]
    %v934 = vld [vmem:[%s916 + $0x88] sm:$0xff]
    %v935 = vld [vmem:[%s916 + $0x90] sm:$0xff]
    %v936 = vld [vmem:[%s916 + $0x98] sm:$0xff]
    %v937 = vld [vmem:[%s916 + $0xa0] sm:$0xff]
    %v938 = vld [vmem:[%s916 + $0xa8] sm:$0xff]
    %v939 = vld [vmem:[%s916 + $0xb0] sm:$0xff]
    %v940 = vld [vmem:[%s916 + $0xb8] sm:$0xff]
    %v941 = vld [vmem:[%s916 + $0xc0] sm:$0xff]
    %v942 = vld [vmem:[%s916 + $0xc8] sm:$0xff]
    %v943 = vld [vmem:[%s916 + $0xd0] sm:$0xff]
    %v944 = vld [vmem:[%s916 + $0xd8] sm:$0xff]
    %v945 = vld [vmem:[%s916 + $0xe0] sm:$0xff]
    %v946 = vld [vmem:[%s916 + $0xe8] sm:$0xff]
    %v947 = vld [vmem:[%s916 + $0xf0] sm:$0xff]
    %v948 = vld [vmem:[%s916 + $0xf8] sm:$0xff]
    %s949 = scalar_lea.vmem %s10, 2
    %v950 = vld [vmem:[%s949] sm:$0x3]
    %v952 = vperm.slane %v950, 0
    %v953 = vperm.slane %v950, 1
    %956 = vmatpush.msra.mxu0 %v947
    %957 = vmatpush.msra.mxu0 %v945
    %958 = vmatpush.msra.mxu0 %v943
    %959 = vmatpush.msra.mxu0 %v941
    %960 = vmatpush.msra.mxu0 %v939
    %961 = vmatpush.msra.mxu0 %v937
    %962 = vmatpush.msra.mxu0 %v935
    %963 = vmatpush.msra.mxu0 %v933
    %964 = vmatpush.msra.mxu0 %v931
    %965 = vmatpush.msra.mxu0 %v929
    %966 = vmatpush.msra.mxu0 %v927
    %967 = vmatpush.msra.mxu0 %v925
    %968 = vmatpush.msra.mxu0 %v923
    %969 = vmatpush.msra.mxu0 %v921
    %970 = vmatpush.msra.mxu0 %v919
    %971 = vmatpush.msra.mxu0 %v917
    %972 = vmatmul.f32.gmra.mxu0 %v915
    %v973 = vpop.f32.mrf.mxu0
    %v974 = vadd.f32 %v952, %v973
    %975 = vdwg.mxu0
    %976 = vmatpush.msra.mxu0 %v948
    %977 = vmatpush.msra.mxu0 %v946
    %978 = vmatpush.msra.mxu0 %v944
    %979 = vmatpush.msra.mxu0 %v942
    %980 = vmatpush.msra.mxu0 %v940
    %981 = vmatpush.msra.mxu0 %v938
    %982 = vmatpush.msra.mxu0 %v936
    %983 = vmatpush.msra.mxu0 %v934
    %984 = vmatpush.msra.mxu0 %v932
    %985 = vmatpush.msra.mxu0 %v930
    %986 = vmatpush.msra.mxu0 %v928
    %987 = vmatpush.msra.mxu0 %v926
    %988 = vmatpush.msra.mxu0 %v924
    %989 = vmatpush.msra.mxu0 %v922
    %990 = vmatpush.msra.mxu0 %v920
    %991 = vmatpush.msra.mxu0 %v918
    %992 = vmatmul.f32.gmra.mxu0 %v915
    %v993 = vpop.f32.mrf.mxu0
    %v994 = vadd.f32 %v953, %v993
    %995 = vdwg.mxu0
    %v996 = vmul.f32 %v974, %v73
    %997 = vmatpush.msra.mxu0 %v92
    %998 = vmatpush.msra.mxu0 %v91
    %999 = vmatpush.msra.mxu0 %v90
    %1000 = vmatpush.msra.mxu0 %v89
    %1001 = vmatpush.msra.mxu0 %v88
    %1002 = vmatpush.msra.mxu0 %v87
    %1003 = vmatpush.msra.mxu0 %v86
    %1004 = vmatpush.msra.mxu0 %v85
    %1005 = vmatpush.msra.mxu0 %v84
    %1006 = vmatpush.msra.mxu0 %v83
    %1007 = vmatpush.msra.mxu0 %v82
    %1008 = vmatpush.msra.mxu0 %v81
    %1009 = vmatpush.msra.mxu0 %v80
    %1010 = vmatpush.msra.mxu0 %v79
    %1011 = vmatpush.msra.mxu0 %v78
    %1012 = vmatpush.msra.mxu0 %v77
    %1013 = vmatmul.f32.gmra.mxu0 %v974
    %v1014 = vpop.f32.mrf.mxu0
    %v1015 = vadd.f32 0.0, %v1014
    %1016 = vdwg.mxu0
    %v1017 = vmul.f32 %v1015, %v74
    %v1018 = vadd.f32 %v996, %v1017
    %v1019 = vmul.f32 %v994, %v75
    %v1021 = vsel %vm231, %v994, 0
    %1023 = vmatpush.msra.mxu0 0.0
    %1024 = vmatpush.msra.mxu0 0.0
    %1025 = vmatpush.msra.mxu0 0.0
    %1026 = vmatpush.msra.mxu0 0.0
    %1027 = vmatpush.msra.mxu0 0.0
    %1028 = vmatpush.msra.mxu0 0.0
    %1029 = vmatpush.msra.mxu0 0.0
    %1030 = vmatpush.msra.mxu0 0.0
    %1031 = vmatpush.msra.mxu0 %v100
    %1032 = vmatpush.msra.mxu0 %v99
    %1033 = vmatpush.msra.mxu0 %v98
    %1034 = vmatpush.msra.mxu0 %v97
    %1035 = vmatpush.msra.mxu0 %v96
    %1036 = vmatpush.msra.mxu0 %v95
    %1037 = vmatpush.msra.mxu0 %v94
    %1038 = vmatpush.msra.mxu0 %v93
    %1039 = vmatmul.f32.gmra.mxu0 %v1021
    %v1040 = vpop.f32.mrf.mxu0
    %v1041 = vadd.f32 0.0, %v1040
    %1042 = vdwg.mxu0
    %v1043 = vmul.f32 %v1041, %v76
    %v1044 = vadd.f32 %v1019, %v1043
    %v1046 = vsel %vm257, %v1018, 0
    %v1049 = vsel %vm257, %v1044, 0
    %1051 = vmatpush.xpose.msra.mxu0 0.0
    %1052 = vmatpush.xpose.msra.mxu0 0.0
    %1053 = vmatpush.xpose.msra.mxu0 0.0
    %1054 = vmatpush.xpose.msra.mxu0 0.0
    %1055 = vmatpush.xpose.msra.mxu0 0.0
    %1056 = vmatpush.xpose.msra.mxu0 0.0
    %1057 = vmatpush.xpose.msra.mxu0 0.0
    %1058 = vmatpush.xpose.msra.mxu0 0.0
    %1059 = vmatpush.xpose.msra.mxu0 0.0
    %1060 = vmatpush.xpose.msra.mxu0 0.0
    %1061 = vmatpush.xpose.msra.mxu0 0.0
    %1062 = vmatpush.xpose.msra.mxu0 0.0
    %1063 = vmatpush.xpose.msra.mxu0 0.0
    %1064 = vmatpush.xpose.msra.mxu0 0.0
    %1065 = vmatpush.xpose.msra.mxu0 0.0
    %1066 = vmatpush.xpose.msra.mxu0 %v1049
    %1067 = vmatmul.f32.gmra.mxu0 %v1046
    %v1068 = vpop.f32.mrf.mxu0
    %v1069 = vadd.f32 0.0, %v1068
    %1070 = vdwg.mxu0
    %v1071 = vmul.f32 %v1069, 0.17677669
    %v1072 = vsel %vm72, %v1071, -1e+30
    %v1073 = vsel %vm286, %v1072, -inf
    %1074 = vmax.xlane.f32.xlu0 %v1073
    %v1075 = vpop.xlane.xlu0 %1074
    %v1076 = vsub.f32 %v1072, %v1075
    %v1077 = vmul.f32 %v1076, 1.442695
    %v1078 = vpow.pop %v1077
    %v1079 = vsel %vm286, %v1078, 0.0
    %1080 = vadd.xlane.f32.xlu0 %v1079
    %v1081 = vpop.xlane.xlu0 %1080
    %v1082 = vrcp.pop %v1081
    %v1083 = vmul.f32 %v1081, %v1082
    %v1084 = vsub.f32 1.0, %v1083
    %v1085 = vmul.f32 %v1082, %v1084
    %v1086 = vadd.f32 %v1082, %v1085
    %vm1087 = vweird.f32 %v1081
    %vm1088 = vweird.f32 %v1082
    %vm1089 = vmor %vm1087, %vm1088
    %v1090 = vsel %vm1089, %v1082, %v1086
    %v1091 = vand.u32 2147483647, %v1081
    %vm1092 = vcmp.eq.f32.partialorder %v1091, 8.507059e+37
    %v1093 = vand.u32 %v1081, 2147483648
    %v1094 = vor.u32 1.1754944e-38, %v1093
    %v1095 = vsel %vm1092, %v1094, %v1090
    %v1096 = vmul.f32 %v1078, %v1095
    %1097 = vrot.lane.b32.xlu0 %v994, 64
    %v1098 = vpop.permute.xlu0 %1097
    %v1101 = vsel %vm286, %v1096, 0
    %1103 = vmatpush.msra.mxu0 0.0
    %1104 = vmatpush.msra.mxu0 0.0
    %1105 = vmatpush.msra.mxu0 0.0
    %1106 = vmatpush.msra.mxu0 0.0
    %1107 = vmatpush.msra.mxu0 0.0
    %1108 = vmatpush.msra.mxu0 0.0
    %1109 = vmatpush.msra.mxu0 0.0
    %1110 = vmatpush.msra.mxu0 0.0
    %1111 = vmatpush.msra.mxu0 0.0
    %1112 = vmatpush.msra.mxu0 0.0
    %1113 = vmatpush.msra.mxu0 0.0
    %1114 = vmatpush.msra.mxu0 0.0
    %1115 = vmatpush.msra.mxu0 0.0
    %1116 = vmatpush.msra.mxu0 0.0
    %1117 = vmatpush.msra.mxu0 0.0
    %1118 = vmatpush.msra.mxu0 %v1098
    %1119 = vmatmul.f32.gmra.mxu0 %v1101
    %v1120 = vpop.f32.mrf.mxu0
    %v1121 = vadd.f32 0.0, %v1120
    %1122 = vdwg.mxu0
    %1123 = vrot.lane.b32.xlu0 %v1018, 96
    %v1124 = vpop.permute.xlu0 %1123
    %v1125 = vsel %vm257, %v1124, 0
    %1127 = vmatpush.xpose.msra.mxu0 0.0
    %1128 = vmatpush.xpose.msra.mxu0 0.0
    %1129 = vmatpush.xpose.msra.mxu0 0.0
    %1130 = vmatpush.xpose.msra.mxu0 0.0
    %1131 = vmatpush.xpose.msra.mxu0 0.0
    %1132 = vmatpush.xpose.msra.mxu0 0.0
    %1133 = vmatpush.xpose.msra.mxu0 0.0
    %1134 = vmatpush.xpose.msra.mxu0 0.0
    %1135 = vmatpush.xpose.msra.mxu0 0.0
    %1136 = vmatpush.xpose.msra.mxu0 0.0
    %1137 = vmatpush.xpose.msra.mxu0 0.0
    %1138 = vmatpush.xpose.msra.mxu0 0.0
    %1139 = vmatpush.xpose.msra.mxu0 0.0
    %1140 = vmatpush.xpose.msra.mxu0 0.0
    %1141 = vmatpush.xpose.msra.mxu0 0.0
    %1142 = vmatpush.xpose.msra.mxu0 %v1049
    %1143 = vmatmul.f32.gmra.mxu0 %v1125
    %v1144 = vpop.f32.mrf.mxu0
    %v1145 = vadd.f32 0.0, %v1144
    %1146 = vdwg.mxu0
    %v1147 = vmul.f32 %v1145, 0.17677669
    %v1148 = vsel %vm72, %v1147, -1e+30
    %v1149 = vsel %vm286, %v1148, -inf
    %1150 = vmax.xlane.f32.xlu0 %v1149
    %v1151 = vpop.xlane.xlu0 %1150
    %v1152 = vsub.f32 %v1148, %v1151
    %v1153 = vmul.f32 %v1152, 1.442695
    %v1154 = vpow.pop %v1153
    %v1155 = vsel %vm286, %v1154, 0.0
    %1156 = vadd.xlane.f32.xlu0 %v1155
    %v1157 = vpop.xlane.xlu0 %1156
    %v1158 = vrcp.pop %v1157
    %v1159 = vmul.f32 %v1157, %v1158
    %v1160 = vsub.f32 1.0, %v1159
    %v1161 = vmul.f32 %v1158, %v1160
    %v1162 = vadd.f32 %v1158, %v1161
    %vm1163 = vweird.f32 %v1157
    %vm1164 = vweird.f32 %v1158
    %vm1165 = vmor %vm1163, %vm1164
    %v1166 = vsel %vm1165, %v1158, %v1162
    %v1167 = vand.u32 2147483647, %v1157
    %vm1168 = vcmp.eq.f32.partialorder %v1167, 8.507059e+37
    %v1169 = vand.u32 %v1157, 2147483648
    %v1170 = vor.u32 1.1754944e-38, %v1169
    %v1171 = vsel %vm1168, %v1170, %v1166
    %v1172 = vmul.f32 %v1154, %v1171
    %v1174 = vsel %vm286, %v1172, 0
    %1176 = vmatpush.msra.mxu0 0.0
    %1177 = vmatpush.msra.mxu0 0.0
    %1178 = vmatpush.msra.mxu0 0.0
    %1179 = vmatpush.msra.mxu0 0.0
    %1180 = vmatpush.msra.mxu0 0.0
    %1181 = vmatpush.msra.mxu0 0.0
    %1182 = vmatpush.msra.mxu0 0.0
    %1183 = vmatpush.msra.mxu0 0.0
    %1184 = vmatpush.msra.mxu0 0.0
    %1185 = vmatpush.msra.mxu0 0.0
    %1186 = vmatpush.msra.mxu0 0.0
    %1187 = vmatpush.msra.mxu0 0.0
    %1188 = vmatpush.msra.mxu0 0.0
    %1189 = vmatpush.msra.mxu0 0.0
    %1190 = vmatpush.msra.mxu0 0.0
    %1191 = vmatpush.msra.mxu0 %v1098
    %1192 = vmatmul.f32.gmra.mxu0 %v1174
    %v1193 = vpop.f32.mrf.mxu0
    %v1194 = vadd.f32 0.0, %v1193
    %1195 = vdwg.mxu0
    %1196 = vrot.lane.b32.xlu0 %v1018, 64
    %v1197 = vpop.permute.xlu0 %1196
    %1198 = vrot.lane.b32.xlu0 %v1044, 96
    %v1199 = vpop.permute.xlu0 %1198
    %v1200 = vsel %vm257, %v1197, 0
    %v1202 = vsel %vm257, %v1199, 0
    %1204 = vmatpush.xpose.msra.mxu0 0.0
    %1205 = vmatpush.xpose.msra.mxu0 0.0
    %1206 = vmatpush.xpose.msra.mxu0 0.0
    %1207 = vmatpush.xpose.msra.mxu0 0.0
    %1208 = vmatpush.xpose.msra.mxu0 0.0
    %1209 = vmatpush.xpose.msra.mxu0 0.0
    %1210 = vmatpush.xpose.msra.mxu0 0.0
    %1211 = vmatpush.xpose.msra.mxu0 0.0
    %1212 = vmatpush.xpose.msra.mxu0 0.0
    %1213 = vmatpush.xpose.msra.mxu0 0.0
    %1214 = vmatpush.xpose.msra.mxu0 0.0
    %1215 = vmatpush.xpose.msra.mxu0 0.0
    %1216 = vmatpush.xpose.msra.mxu0 0.0
    %1217 = vmatpush.xpose.msra.mxu0 0.0
    %1218 = vmatpush.xpose.msra.mxu0 0.0
    %1219 = vmatpush.xpose.msra.mxu0 %v1202
    %1220 = vmatmul.f32.gmra.mxu0 %v1200
    %v1221 = vpop.f32.mrf.mxu0
    %v1222 = vadd.f32 0.0, %v1221
    %1223 = vdwg.mxu0
    %v1224 = vmul.f32 %v1222, 0.17677669
    %v1225 = vsel %vm72, %v1224, -1e+30
    %v1226 = vsel %vm286, %v1225, -inf
    %1227 = vmax.xlane.f32.xlu0 %v1226
    %v1228 = vpop.xlane.xlu0 %1227
    %v1229 = vsub.f32 %v1225, %v1228
    %v1230 = vmul.f32 %v1229, 1.442695
    %v1231 = vpow.pop %v1230
    %v1232 = vsel %vm286, %v1231, 0.0
    %1233 = vadd.xlane.f32.xlu0 %v1232
    %v1234 = vpop.xlane.xlu0 %1233
    %v1235 = vrcp.pop %v1234
    %v1236 = vmul.f32 %v1234, %v1235
    %v1237 = vsub.f32 1.0, %v1236
    %v1238 = vmul.f32 %v1235, %v1237
    %v1239 = vadd.f32 %v1235, %v1238
    %vm1240 = vweird.f32 %v1234
    %vm1241 = vweird.f32 %v1235
    %vm1242 = vmor %vm1240, %vm1241
    %v1243 = vsel %vm1242, %v1235, %v1239
    %v1244 = vand.u32 2147483647, %v1234
    %vm1245 = vcmp.eq.f32.partialorder %v1244, 8.507059e+37
    %v1246 = vand.u32 %v1234, 2147483648
    %v1247 = vor.u32 1.1754944e-38, %v1246
    %v1248 = vsel %vm1245, %v1247, %v1243
    %v1249 = vmul.f32 %v1231, %v1248
    %1250 = vrot.lane.b32.xlu0 %v994, 32
    %v1251 = vpop.permute.xlu0 %1250
    %v1254 = vsel %vm286, %v1249, 0
    %1256 = vmatpush.msra.mxu0 0.0
    %1257 = vmatpush.msra.mxu0 0.0
    %1258 = vmatpush.msra.mxu0 0.0
    %1259 = vmatpush.msra.mxu0 0.0
    %1260 = vmatpush.msra.mxu0 0.0
    %1261 = vmatpush.msra.mxu0 0.0
    %1262 = vmatpush.msra.mxu0 0.0
    %1263 = vmatpush.msra.mxu0 0.0
    %1264 = vmatpush.msra.mxu0 0.0
    %1265 = vmatpush.msra.mxu0 0.0
    %1266 = vmatpush.msra.mxu0 0.0
    %1267 = vmatpush.msra.mxu0 0.0
    %1268 = vmatpush.msra.mxu0 0.0
    %1269 = vmatpush.msra.mxu0 0.0
    %1270 = vmatpush.msra.mxu0 0.0
    %1271 = vmatpush.msra.mxu0 %v1251
    %1272 = vmatmul.f32.gmra.mxu0 %v1254
    %v1273 = vpop.f32.mrf.mxu0
    %v1274 = vadd.f32 0.0, %v1273
    %1275 = vdwg.mxu0
    %1276 = vrot.lane.b32.xlu0 %v1018, 32
    %v1277 = vpop.permute.xlu0 %1276
    %v1278 = vsel %vm257, %v1277, 0
    %1280 = vmatpush.xpose.msra.mxu0 0.0
    %1281 = vmatpush.xpose.msra.mxu0 0.0
    %1282 = vmatpush.xpose.msra.mxu0 0.0
    %1283 = vmatpush.xpose.msra.mxu0 0.0
    %1284 = vmatpush.xpose.msra.mxu0 0.0
    %1285 = vmatpush.xpose.msra.mxu0 0.0
    %1286 = vmatpush.xpose.msra.mxu0 0.0
    %1287 = vmatpush.xpose.msra.mxu0 0.0
    %1288 = vmatpush.xpose.msra.mxu0 0.0
    %1289 = vmatpush.xpose.msra.mxu0 0.0
    %1290 = vmatpush.xpose.msra.mxu0 0.0
    %1291 = vmatpush.xpose.msra.mxu0 0.0
    %1292 = vmatpush.xpose.msra.mxu0 0.0
    %1293 = vmatpush.xpose.msra.mxu0 0.0
    %1294 = vmatpush.xpose.msra.mxu0 0.0
    %1295 = vmatpush.xpose.msra.mxu0 %v1202
    %1296 = vmatmul.f32.gmra.mxu0 %v1278
    %v1297 = vpop.f32.mrf.mxu0
    %v1298 = vadd.f32 0.0, %v1297
    %1299 = vdwg.mxu0
    %v1300 = vmul.f32 %v1298, 0.17677669
    %v1301 = vsel %vm72, %v1300, -1e+30
    %v1302 = vsel %vm286, %v1301, -inf
    %1303 = vmax.xlane.f32.xlu0 %v1302
    %v1304 = vpop.xlane.xlu0 %1303
    %v1305 = vsub.f32 %v1301, %v1304
    %v1306 = vmul.f32 %v1305, 1.442695
    %v1307 = vpow.pop %v1306
    %v1308 = vsel %vm286, %v1307, 0.0
    %1309 = vadd.xlane.f32.xlu0 %v1308
    %v1310 = vpop.xlane.xlu0 %1309
    %v1311 = vrcp.pop %v1310
    %v1312 = vmul.f32 %v1310, %v1311
    %v1313 = vsub.f32 1.0, %v1312
    %v1314 = vmul.f32 %v1311, %v1313
    %v1315 = vadd.f32 %v1311, %v1314
    %vm1316 = vweird.f32 %v1310
    %vm1317 = vweird.f32 %v1311
    %vm1318 = vmor %vm1316, %vm1317
    %v1319 = vsel %vm1318, %v1311, %v1315
    %v1320 = vand.u32 2147483647, %v1310
    %vm1321 = vcmp.eq.f32.partialorder %v1320, 8.507059e+37
    %v1322 = vand.u32 %v1310, 2147483648
    %v1323 = vor.u32 1.1754944e-38, %v1322
    %v1324 = vsel %vm1321, %v1323, %v1319
    %v1325 = vmul.f32 %v1307, %v1324
    %v1327 = vsel %vm286, %v1325, 0
    %1329 = vmatpush.msra.mxu0 0.0
    %1330 = vmatpush.msra.mxu0 0.0
    %1331 = vmatpush.msra.mxu0 0.0
    %1332 = vmatpush.msra.mxu0 0.0
    %1333 = vmatpush.msra.mxu0 0.0
    %1334 = vmatpush.msra.mxu0 0.0
    %1335 = vmatpush.msra.mxu0 0.0
    %1336 = vmatpush.msra.mxu0 0.0
    %1337 = vmatpush.msra.mxu0 0.0
    %1338 = vmatpush.msra.mxu0 0.0
    %1339 = vmatpush.msra.mxu0 0.0
    %1340 = vmatpush.msra.mxu0 0.0
    %1341 = vmatpush.msra.mxu0 0.0
    %1342 = vmatpush.msra.mxu0 0.0
    %1343 = vmatpush.msra.mxu0 0.0
    %1344 = vmatpush.msra.mxu0 %v1251
    %1345 = vmatmul.f32.gmra.mxu0 %v1327
    %v1346 = vpop.f32.mrf.mxu0
    %v1347 = vadd.f32 0.0, %v1346
    %1348 = vdwg.mxu0
    %1350 = vrot.lane.b32.xlu0 %v1194, 32
    %v1351 = vpop.permute.xlu0 %1350
    %1354 = vrot.lane.b32.xlu0 %v1274, 64
    %v1355 = vpop.permute.xlu0 %1354
    %1358 = vrot.lane.b32.xlu0 %v1347, 96
    %v1359 = vpop.permute.xlu0 %1358
    %v1361 = vsel %vm257, %v1121, %v1351
    %v1362 = vsel %vm231, %v1361, %v1355
    %v1363 = vsel %vm577, %v1362, %v1359
    %s1364 = scalar_lea.vmem %s11, 128
    %v1365 = vld [vmem:[%s1364] sm:$0xff]
    %v1366 = vld [vmem:[%s1364 + $0x8] sm:$0xff]
    %v1367 = vld [vmem:[%s1364 + $0x10] sm:$0xff]
    %v1368 = vld [vmem:[%s1364 + $0x18] sm:$0xff]
    %v1369 = vld [vmem:[%s1364 + $0x20] sm:$0xff]
    %v1370 = vld [vmem:[%s1364 + $0x28] sm:$0xff]
    %v1371 = vld [vmem:[%s1364 + $0x30] sm:$0xff]
    %v1372 = vld [vmem:[%s1364 + $0x38] sm:$0xff]
    %v1373 = vld [vmem:[%s1364 + $0x40] sm:$0xff]
    %v1374 = vld [vmem:[%s1364 + $0x48] sm:$0xff]
    %v1375 = vld [vmem:[%s1364 + $0x50] sm:$0xff]
    %v1376 = vld [vmem:[%s1364 + $0x58] sm:$0xff]
    %v1377 = vld [vmem:[%s1364 + $0x60] sm:$0xff]
    %v1378 = vld [vmem:[%s1364 + $0x68] sm:$0xff]
    %v1379 = vld [vmem:[%s1364 + $0x70] sm:$0xff]
    %v1380 = vld [vmem:[%s1364 + $0x78] sm:$0xff]
    %1381 = vmatpush.msra.mxu0 %v1380
    %1382 = vmatpush.msra.mxu0 %v1379
    %1383 = vmatpush.msra.mxu0 %v1378
    %1384 = vmatpush.msra.mxu0 %v1377
    %1385 = vmatpush.msra.mxu0 %v1376
    %1386 = vmatpush.msra.mxu0 %v1375
    %1387 = vmatpush.msra.mxu0 %v1374
    %1388 = vmatpush.msra.mxu0 %v1373
    %1389 = vmatpush.msra.mxu0 %v1372
    %1390 = vmatpush.msra.mxu0 %v1371
    %1391 = vmatpush.msra.mxu0 %v1370
    %1392 = vmatpush.msra.mxu0 %v1369
    %1393 = vmatpush.msra.mxu0 %v1368
    %1394 = vmatpush.msra.mxu0 %v1367
    %1395 = vmatpush.msra.mxu0 %v1366
    %1396 = vmatpush.msra.mxu0 %v1365
    %1397 = vmatmul.f32.gmra.mxu0 %v1363
    %v1398 = vpop.f32.mrf.mxu0
    %v1399 = vadd.f32 %v892, %v1398
    %1400 = vdwg.mxu0
    %s1401 = scalar_lea.vmem %s8, 1
    %v1402 = vld [vmem:[%s1401] sm:$0x1]
    %v1403 = vmul.f32 %v1399, %v1399
    %1404 = vadd.xlane.f32.xlu0 %v1403
    %v1405 = vpop.xlane.xlu0 %1404
    %v1406 = vmul.f32 %v1405, %v111
    %v1407 = vadd.f32 %v1406, 1e-06
    %v1408 = vrsqrt.pop %v1407
    %v1409 = vmul.f32 %v1408, %v1407
    %v1410 = vmul.f32 %v1409, %v1408
    %v1411 = vmul.f32 0.5, %v1410
    %v1412 = vsub.f32 1.5, %v1411
    %v1413 = vmul.f32 %v1408, %v1412
    %vm1414 = vweird.f32 %v1407
    %vm1415 = vweird.f32 %v1408
    %vm1416 = vmor %vm1414, %vm1415
    %v1417 = vsel %vm1416, %v1408, %v1413
    %v1418 = vmul.f32 %v1399, %v1417
    %v1420 = vperm.slane %v1402, 0
    %v1422 = vmul.f32 %v1418, %v1420
    %s1423 = scalar_lea.vmem %s12, 512
    %v1424 = vld [vmem:[%s1423] sm:$0xff]
    %v1425 = vld [vmem:[%s1423 + $0x8] sm:$0xff]
    %v1426 = vld [vmem:[%s1423 + $0x10] sm:$0xff]
    %v1427 = vld [vmem:[%s1423 + $0x18] sm:$0xff]
    %v1428 = vld [vmem:[%s1423 + $0x20] sm:$0xff]
    %v1429 = vld [vmem:[%s1423 + $0x28] sm:$0xff]
    %v1430 = vld [vmem:[%s1423 + $0x30] sm:$0xff]
    %v1431 = vld [vmem:[%s1423 + $0x38] sm:$0xff]
    %v1432 = vld [vmem:[%s1423 + $0x40] sm:$0xff]
    %v1433 = vld [vmem:[%s1423 + $0x48] sm:$0xff]
    %v1434 = vld [vmem:[%s1423 + $0x50] sm:$0xff]
    %v1435 = vld [vmem:[%s1423 + $0x58] sm:$0xff]
    %v1436 = vld [vmem:[%s1423 + $0x60] sm:$0xff]
    %v1437 = vld [vmem:[%s1423 + $0x68] sm:$0xff]
    %v1438 = vld [vmem:[%s1423 + $0x70] sm:$0xff]
    %v1439 = vld [vmem:[%s1423 + $0x78] sm:$0xff]
    %v1440 = vld [vmem:[%s1423 + $0x80] sm:$0xff]
    %v1441 = vld [vmem:[%s1423 + $0x88] sm:$0xff]
    %v1442 = vld [vmem:[%s1423 + $0x90] sm:$0xff]
    %v1443 = vld [vmem:[%s1423 + $0x98] sm:$0xff]
    %v1444 = vld [vmem:[%s1423 + $0xa0] sm:$0xff]
    %v1445 = vld [vmem:[%s1423 + $0xa8] sm:$0xff]
    %v1446 = vld [vmem:[%s1423 + $0xb0] sm:$0xff]
    %v1447 = vld [vmem:[%s1423 + $0xb8] sm:$0xff]
    %v1448 = vld [vmem:[%s1423 + $0xc0] sm:$0xff]
    %v1449 = vld [vmem:[%s1423 + $0xc8] sm:$0xff]
    %v1450 = vld [vmem:[%s1423 + $0xd0] sm:$0xff]
    %v1451 = vld [vmem:[%s1423 + $0xd8] sm:$0xff]
    %v1452 = vld [vmem:[%s1423 + $0xe0] sm:$0xff]
    %v1453 = vld [vmem:[%s1423 + $0xe8] sm:$0xff]
    %v1454 = vld [vmem:[%s1423 + $0xf0] sm:$0xff]
    %v1455 = vld [vmem:[%s1423 + $0xf8] sm:$0xff]
    %v1456 = vld [vmem:[%s1423 + $0x100] sm:$0xff]
    %v1457 = vld [vmem:[%s1423 + $0x108] sm:$0xff]
    %v1458 = vld [vmem:[%s1423 + $0x110] sm:$0xff]
    %v1459 = vld [vmem:[%s1423 + $0x118] sm:$0xff]
    %v1460 = vld [vmem:[%s1423 + $0x120] sm:$0xff]
    %v1461 = vld [vmem:[%s1423 + $0x128] sm:$0xff]
    %v1462 = vld [vmem:[%s1423 + $0x130] sm:$0xff]
    %v1463 = vld [vmem:[%s1423 + $0x138] sm:$0xff]
    %v1464 = vld [vmem:[%s1423 + $0x140] sm:$0xff]
    %v1465 = vld [vmem:[%s1423 + $0x148] sm:$0xff]
    %v1466 = vld [vmem:[%s1423 + $0x150] sm:$0xff]
    %v1467 = vld [vmem:[%s1423 + $0x158] sm:$0xff]
    %v1468 = vld [vmem:[%s1423 + $0x160] sm:$0xff]
    %v1469 = vld [vmem:[%s1423 + $0x168] sm:$0xff]
    %v1470 = vld [vmem:[%s1423 + $0x170] sm:$0xff]
    %v1471 = vld [vmem:[%s1423 + $0x178] sm:$0xff]
    %v1472 = vld [vmem:[%s1423 + $0x180] sm:$0xff]
    %v1473 = vld [vmem:[%s1423 + $0x188] sm:$0xff]
    %v1474 = vld [vmem:[%s1423 + $0x190] sm:$0xff]
    %v1475 = vld [vmem:[%s1423 + $0x198] sm:$0xff]
    %v1476 = vld [vmem:[%s1423 + $0x1a0] sm:$0xff]
    %v1477 = vld [vmem:[%s1423 + $0x1a8] sm:$0xff]
    %v1478 = vld [vmem:[%s1423 + $0x1b0] sm:$0xff]
    %v1479 = vld [vmem:[%s1423 + $0x1b8] sm:$0xff]
    %v1480 = vld [vmem:[%s1423 + $0x1c0] sm:$0xff]
    %v1481 = vld [vmem:[%s1423 + $0x1c8] sm:$0xff]
    %v1482 = vld [vmem:[%s1423 + $0x1d0] sm:$0xff]
    %v1483 = vld [vmem:[%s1423 + $0x1d8] sm:$0xff]
    %v1484 = vld [vmem:[%s1423 + $0x1e0] sm:$0xff]
    %v1485 = vld [vmem:[%s1423 + $0x1e8] sm:$0xff]
    %v1486 = vld [vmem:[%s1423 + $0x1f0] sm:$0xff]
    %v1487 = vld [vmem:[%s1423 + $0x1f8] sm:$0xff]
    %1488 = vmatpush.msra.mxu0 %v1484
    %1489 = vmatpush.msra.mxu0 %v1480
    %1490 = vmatpush.msra.mxu0 %v1476
    %1491 = vmatpush.msra.mxu0 %v1472
    %1492 = vmatpush.msra.mxu0 %v1468
    %1493 = vmatpush.msra.mxu0 %v1464
    %1494 = vmatpush.msra.mxu0 %v1460
    %1495 = vmatpush.msra.mxu0 %v1456
    %1496 = vmatpush.msra.mxu0 %v1452
    %1497 = vmatpush.msra.mxu0 %v1448
    %1498 = vmatpush.msra.mxu0 %v1444
    %1499 = vmatpush.msra.mxu0 %v1440
    %1500 = vmatpush.msra.mxu0 %v1436
    %1501 = vmatpush.msra.mxu0 %v1432
    %1502 = vmatpush.msra.mxu0 %v1428
    %1503 = vmatpush.msra.mxu0 %v1424
    %1504 = vmatmul.f32.gmra.mxu0 %v1422
    %v1505 = vpop.f32.mrf.mxu0
    %v1506 = vadd.f32 0.0, %v1505
    %1507 = vdwg.mxu0
    %1508 = vmatpush.msra.mxu0 %v1485
    %1509 = vmatpush.msra.mxu0 %v1481
    %1510 = vmatpush.msra.mxu0 %v1477
    %1511 = vmatpush.msra.mxu0 %v1473
    %1512 = vmatpush.msra.mxu0 %v1469
    %1513 = vmatpush.msra.mxu0 %v1465
    %1514 = vmatpush.msra.mxu0 %v1461
    %1515 = vmatpush.msra.mxu0 %v1457
    %1516 = vmatpush.msra.mxu0 %v1453
    %1517 = vmatpush.msra.mxu0 %v1449
    %1518 = vmatpush.msra.mxu0 %v1445
    %1519 = vmatpush.msra.mxu0 %v1441
    %1520 = vmatpush.msra.mxu0 %v1437
    %1521 = vmatpush.msra.mxu0 %v1433
    %1522 = vmatpush.msra.mxu0 %v1429
    %1523 = vmatpush.msra.mxu0 %v1425
    %1524 = vmatmul.f32.gmra.mxu0 %v1422
    %v1525 = vpop.f32.mrf.mxu0
    %v1526 = vadd.f32 0.0, %v1525
    %1527 = vdwg.mxu0
    %1528 = vmatpush.msra.mxu0 %v1486
    %1529 = vmatpush.msra.mxu0 %v1482
    %1530 = vmatpush.msra.mxu0 %v1478
    %1531 = vmatpush.msra.mxu0 %v1474
    %1532 = vmatpush.msra.mxu0 %v1470
    %1533 = vmatpush.msra.mxu0 %v1466
    %1534 = vmatpush.msra.mxu0 %v1462
    %1535 = vmatpush.msra.mxu0 %v1458
    %1536 = vmatpush.msra.mxu0 %v1454
    %1537 = vmatpush.msra.mxu0 %v1450
    %1538 = vmatpush.msra.mxu0 %v1446
    %1539 = vmatpush.msra.mxu0 %v1442
    %1540 = vmatpush.msra.mxu0 %v1438
    %1541 = vmatpush.msra.mxu0 %v1434
    %1542 = vmatpush.msra.mxu0 %v1430
    %1543 = vmatpush.msra.mxu0 %v1426
    %1544 = vmatmul.f32.gmra.mxu0 %v1422
    %v1545 = vpop.f32.mrf.mxu0
    %v1546 = vadd.f32 0.0, %v1545
    %1547 = vdwg.mxu0
    %1548 = vmatpush.msra.mxu0 %v1487
    %1549 = vmatpush.msra.mxu0 %v1483
    %1550 = vmatpush.msra.mxu0 %v1479
    %1551 = vmatpush.msra.mxu0 %v1475
    %1552 = vmatpush.msra.mxu0 %v1471
    %1553 = vmatpush.msra.mxu0 %v1467
    %1554 = vmatpush.msra.mxu0 %v1463
    %1555 = vmatpush.msra.mxu0 %v1459
    %1556 = vmatpush.msra.mxu0 %v1455
    %1557 = vmatpush.msra.mxu0 %v1451
    %1558 = vmatpush.msra.mxu0 %v1447
    %1559 = vmatpush.msra.mxu0 %v1443
    %1560 = vmatpush.msra.mxu0 %v1439
    %1561 = vmatpush.msra.mxu0 %v1435
    %1562 = vmatpush.msra.mxu0 %v1431
    %1563 = vmatpush.msra.mxu0 %v1427
    %1564 = vmatmul.f32.gmra.mxu0 %v1422
    %v1565 = vpop.f32.mrf.mxu0
    %v1566 = vadd.f32 0.0, %v1565
    %1567 = vdwg.mxu0
    %v1568 = vxor.u32 %v1506, 2147483648
    %v1569 = vxor.u32 %v1526, 2147483648
    %v1570 = vmul.f32 %v1568, 1.442695
    %v1571 = vpow.pop %v1570
    %v1572 = vmul.f32 %v1569, 1.442695
    %v1573 = vpow.pop %v1572
    %v1574 = vadd.f32 %v1571, 1.0
    %v1575 = vadd.f32 %v1573, 1.0
    %v1576 = vrcp.pop %v1574
    %v1577 = vmul.f32 %v1574, %v1576
    %v1578 = vsub.f32 1.0, %v1577
    %v1579 = vmul.f32 %v1576, %v1578
    %v1580 = vadd.f32 %v1576, %v1579
    %vm1581 = vweird.f32 %v1574
    %vm1582 = vweird.f32 %v1576
    %vm1583 = vmor %vm1581, %vm1582
    %v1584 = vsel %vm1583, %v1576, %v1580
    %v1585 = vand.u32 2147483647, %v1574
    %vm1586 = vcmp.eq.f32.partialorder %v1585, 8.507059e+37
    %v1587 = vand.u32 %v1574, 2147483648
    %v1588 = vor.u32 1.1754944e-38, %v1587
    %v1589 = vsel %vm1586, %v1588, %v1584
    %v1590 = vmul.f32 1.0, %v1589
    %v1591 = vrcp.pop %v1575
    %v1592 = vmul.f32 %v1575, %v1591
    %v1593 = vsub.f32 1.0, %v1592
    %v1594 = vmul.f32 %v1591, %v1593
    %v1595 = vadd.f32 %v1591, %v1594
    %vm1596 = vweird.f32 %v1575
    %vm1597 = vweird.f32 %v1591
    %vm1598 = vmor %vm1596, %vm1597
    %v1599 = vsel %vm1598, %v1591, %v1595
    %v1600 = vand.u32 2147483647, %v1575
    %vm1601 = vcmp.eq.f32.partialorder %v1600, 8.507059e+37
    %v1602 = vand.u32 %v1575, 2147483648
    %v1603 = vor.u32 1.1754944e-38, %v1602
    %v1604 = vsel %vm1601, %v1603, %v1599
    %v1605 = vmul.f32 1.0, %v1604
    %v1606 = vmul.f32 %v1506, %v1590
    %v1607 = vmul.f32 %v1526, %v1605
    %v1608 = vmul.f32 %v1606, %v1546
    %v1609 = vmul.f32 %v1607, %v1566
    %s1610 = scalar_lea.vmem [#allocation2], 256
    %v1611 = vld [vmem:[%s1610] sm:$0xff]
    %v1612 = vld [vmem:[%s1610 + $0x8] sm:$0xff]
    %v1613 = vld [vmem:[%s1610 + $0x10] sm:$0xff]
    %v1614 = vld [vmem:[%s1610 + $0x18] sm:$0xff]
    %v1615 = vld [vmem:[%s1610 + $0x20] sm:$0xff]
    %v1616 = vld [vmem:[%s1610 + $0x28] sm:$0xff]
    %v1617 = vld [vmem:[%s1610 + $0x30] sm:$0xff]
    %v1618 = vld [vmem:[%s1610 + $0x38] sm:$0xff]
    %v1619 = vld [vmem:[%s1610 + $0x40] sm:$0xff]
    %v1620 = vld [vmem:[%s1610 + $0x48] sm:$0xff]
    %v1621 = vld [vmem:[%s1610 + $0x50] sm:$0xff]
    %v1622 = vld [vmem:[%s1610 + $0x58] sm:$0xff]
    %v1623 = vld [vmem:[%s1610 + $0x60] sm:$0xff]
    %v1624 = vld [vmem:[%s1610 + $0x68] sm:$0xff]
    %v1625 = vld [vmem:[%s1610 + $0x70] sm:$0xff]
    %v1626 = vld [vmem:[%s1610 + $0x78] sm:$0xff]
    %v1627 = vld [vmem:[%s1610 + $0x80] sm:$0xff]
    %v1628 = vld [vmem:[%s1610 + $0x88] sm:$0xff]
    %v1629 = vld [vmem:[%s1610 + $0x90] sm:$0xff]
    %v1630 = vld [vmem:[%s1610 + $0x98] sm:$0xff]
    %v1631 = vld [vmem:[%s1610 + $0xa0] sm:$0xff]
    %v1632 = vld [vmem:[%s1610 + $0xa8] sm:$0xff]
    %v1633 = vld [vmem:[%s1610 + $0xb0] sm:$0xff]
    %v1634 = vld [vmem:[%s1610 + $0xb8] sm:$0xff]
    %v1635 = vld [vmem:[%s1610 + $0xc0] sm:$0xff]
    %v1636 = vld [vmem:[%s1610 + $0xc8] sm:$0xff]
    %v1637 = vld [vmem:[%s1610 + $0xd0] sm:$0xff]
    %v1638 = vld [vmem:[%s1610 + $0xd8] sm:$0xff]
    %v1639 = vld [vmem:[%s1610 + $0xe0] sm:$0xff]
    %v1640 = vld [vmem:[%s1610 + $0xe8] sm:$0xff]
    %v1641 = vld [vmem:[%s1610 + $0xf0] sm:$0xff]
    %v1642 = vld [vmem:[%s1610 + $0xf8] sm:$0xff]
    %1643 = vmatpush.msra.mxu0 %v1626
    %1644 = vmatpush.msra.mxu0 %v1625
    %1645 = vmatpush.msra.mxu0 %v1624
    %1646 = vmatpush.msra.mxu0 %v1623
    %1647 = vmatpush.msra.mxu0 %v1622
    %1648 = vmatpush.msra.mxu0 %v1621
    %1649 = vmatpush.msra.mxu0 %v1620
    %1650 = vmatpush.msra.mxu0 %v1619
    %1651 = vmatpush.msra.mxu0 %v1618
    %1652 = vmatpush.msra.mxu0 %v1617
    %1653 = vmatpush.msra.mxu0 %v1616
    %1654 = vmatpush.msra.mxu0 %v1615
    %1655 = vmatpush.msra.mxu0 %v1614
    %1656 = vmatpush.msra.mxu0 %v1613
    %1657 = vmatpush.msra.mxu0 %v1612
    %1658 = vmatpush.msra.mxu0 %v1611
    %1659 = vmatmul.f32.gmra.mxu0 %v1608
    %v1660 = vpop.f32.mrf.mxu0
    %v1661 = vadd.f32 %v1399, %v1660
    %1662 = vdwg.mxu0
    %1663 = vmatpush.msra.mxu0 %v1642
    %1664 = vmatpush.msra.mxu0 %v1641
    %1665 = vmatpush.msra.mxu0 %v1640
    %1666 = vmatpush.msra.mxu0 %v1639
    %1667 = vmatpush.msra.mxu0 %v1638
    %1668 = vmatpush.msra.mxu0 %v1637
    %1669 = vmatpush.msra.mxu0 %v1636
    %1670 = vmatpush.msra.mxu0 %v1635
    %1671 = vmatpush.msra.mxu0 %v1634
    %1672 = vmatpush.msra.mxu0 %v1633
    %1673 = vmatpush.msra.mxu0 %v1632
    %1674 = vmatpush.msra.mxu0 %v1631
    %1675 = vmatpush.msra.mxu0 %v1630
    %1676 = vmatpush.msra.mxu0 %v1629
    %1677 = vmatpush.msra.mxu0 %v1628
    %1678 = vmatpush.msra.mxu0 %v1627
    %1679 = vmatmul.f32.gmra.mxu0 %v1609
    %v1680 = vpop.f32.mrf.mxu0
    %v1681 = vadd.f32 %v1661, %v1680
    %1682 = vdwg.mxu0
    %v1683 = vld [vmem:[%s14] sm:$0x1]
    %v1684 = vmul.f32 %v1681, %v1681
    %1685 = vadd.xlane.f32.xlu0 %v1684
    %v1686 = vpop.xlane.xlu0 %1685
    %v1687 = vmul.f32 %v1686, %v111
    %v1688 = vadd.f32 %v1687, 1e-06
    %v1689 = vrsqrt.pop %v1688
    %v1690 = vmul.f32 %v1689, %v1688
    %v1691 = vmul.f32 %v1690, %v1689
    %v1692 = vmul.f32 0.5, %v1691
    %v1693 = vsub.f32 1.5, %v1692
    %v1694 = vmul.f32 %v1689, %v1693
    %vm1695 = vweird.f32 %v1688
    %vm1696 = vweird.f32 %v1689
    %vm1697 = vmor %vm1695, %vm1696
    %v1698 = vsel %vm1697, %v1689, %v1694
    %v1699 = vmul.f32 %v1681, %v1698
    %v1701 = vperm.slane %v1683, 0
    %v1703 = vmul.f32 %v1699, %v1701
    %1704 = vst [vmem:[#allocation5] sm:$0xff] %v1703
    // Predicated region
    $region66: #{tinyllm_forward.1} parent=1 // pred_check
      _
    $region67: #{tinyllm_forward.1} parent=1 // pred_check_branch
      %1706 = sbr.rel (0) target = $region69
    $region68: #{tinyllm_forward.1} parent=1 // pred_region
      %1708 = vsyncadd [#allocation4], 0
      %s1710 = sshll.u32 [#allocation5], 4
      %s1711 = int_to_ptr.vmem [resolvable:$true] %s1710
      %s1712 = sshll.u32 %s15, 4
      %s1713 = int_to_ptr.hbm [resolvable:$true] %s1712
      %1715 = dma.vmem_to_hbm [thread:$0]  %s1711, 128, %s1713, [#allocation4]
    $region69: #{tinyllm_forward.1} parent=1 // pred_fallthru
      _
    // Predicated region
    $region70: #{tinyllm_forward.1} parent=1 // pred_check
      _
    $region71: #{tinyllm_forward.1} parent=1 // pred_check_branch
      %1717 = sbr.rel (0) target = $region73
    $region72: #{tinyllm_forward.1} parent=1 // pred_region
      %1719 = dma.done [#allocation4], 128
    $region73: #{tinyllm_forward.1} parent=1 // pred_fallthru
      _
    %1720 = vsyncpa [#allocation3], 1
    %1721 = vsyncpa [#allocation4], 1

</llo_original>
